<compile_context>
chip_gen: v7x
topology: tpu7x:2x2x1
jax: 0.10.0
libtpu: 0.0.40
codegen_flags: <defaults>
</compile_context>

<pallas_src>
import math

import jax
import jax.numpy as jnp
from jax import lax
from jax.experimental import pallas as pl
from jax.experimental.pallas import tpu as pltpu

# ----------------------------- hyper-params ---------------------------------
INPUT_DIM = 20      # src vocab
OUTPUT_DIM = 24     # trg vocab
EMB_DIM = 32
HID_DIM = 32
ENC_LAYERS = 2
DEC_LAYERS = 2
KERNEL_SIZE = 3
MAX_LEN = 16
SCALE = math.sqrt(0.5)

B = 2
SRC_LEN = 8
TRG_LEN = 8

KH = KERNEL_SIZE * HID_DIM          # im2col contraction dim (96)
H2 = 2 * HID_DIM                    # conv output channels pre-GLU (64)


# --------------------------- fused Pallas kernel -----------------------------
def _seq2seq_fused_kernel(
    # activations
    enc_emb_ref, dec_emb_ref,
    # encoder weights
    enc_e2h_w, enc_e2h_b, enc_conv_w, enc_conv_b, enc_h2e_w, enc_h2e_b,
    # decoder weights
    dec_e2h_w, dec_e2h_b, dec_conv_w, dec_conv_b,
    attn_h2e_w, attn_h2e_b, attn_e2h_w, attn_e2h_b,
    dec_h2e_w, dec_h2e_b, fc_w, fc_b,
    # outputs
    out_ref, attn_ref,
    # scratch
    cols_ref,
):
    f32 = jnp.float32

    def dense(x, w_ref, b_ref):
        return jnp.dot(x, w_ref[...], preferred_element_type=f32) + b_ref[...]

    def conv_glu(x, w_ref, b_ref, layer, seq_len, pad_left):
        """1-D conv + GLU over a [B*seq_len, HID_DIM] slab via im2col + 1 matmul.

        out[b, s] = GLU( sum_k x[b, s + k - pad_left] @ W[k] + bias ),
        out-of-range rows contribute zeros (pad value 0).
        """
        rows = B * seq_len
        cols_ref[...] = jnp.zeros_like(cols_ref)
        for bi in range(B):                      # static unroll (B=2), no launches
            base = bi * seq_len
            for k in range(KERNEL_SIZE):         # static unroll (K=3)
                shift = k - pad_left             # source row = dest row + shift
                lo = max(0, -shift)
                hi = min(seq_len, seq_len - shift)
                if hi <= lo:
                    continue
                cols_ref[base + lo:base + hi,
                         k * HID_DIM:(k + 1) * HID_DIM] = (
                    x[base + lo + shift:base + hi + shift, :]
                )
        acc = (
            jnp.dot(cols_ref[0:rows, :], w_ref[layer],
                    preferred_element_type=f32)
            + b_ref[layer]
        )                                        # [B*seq, 2H]
        a = acc[:, :HID_DIM]
        g = acc[:, HID_DIM:]
        return a * jax.nn.sigmoid(g)             # F.glu over channel dim

    # ------------------------------ encoder ---------------------------------
    enc_embedded = enc_emb_ref[...]                               # [B*S, E]
    x = dense(enc_embedded, enc_e2h_w, enc_e2h_b)                 # [B*S, H]
    for l in range(ENC_LAYERS):
        conved = conv_glu(x, enc_conv_w, enc_conv_b, l, SRC_LEN,
                          (KERNEL_SIZE - 1) // 2)                 # 'same' conv
        x = (conved + x) * SCALE                                  # residual
    enc_conved = dense(x, enc_h2e_w, enc_h2e_b)                   # [B*S, E]
    enc_combined = (enc_conved + enc_embedded) * SCALE            # [B*S, E]

    # ------------------------------ decoder ---------------------------------
    dec_embedded = dec_emb_ref[...]                               # [B*T, E]
    y = dense(dec_embedded, dec_e2h_w, dec_e2h_b)                 # [B*T, H]
    for l in range(DEC_LAYERS):
        # TODO(synk): causal left-pad uses zeros in hidden space; this matches the
        # PyTorch reference only when trg_pad_idx == 0.
        conved = conv_glu(y, dec_conv_w, dec_conv_b, l, TRG_LEN,
                          KERNEL_SIZE - 1)                        # causal conv
        # --- attention block ---
        conved_emb = dense(conved, attn_h2e_w, attn_h2e_b)        # [B*T, E]
        combined = (conved_emb + dec_embedded) * SCALE
        attended_parts = []
        for bi in range(B):                                       # static unroll
            q = combined[bi * TRG_LEN:(bi + 1) * TRG_LEN, :]       # [T, E]
            kk = enc_conved[bi * SRC_LEN:(bi + 1) * SRC_LEN, :]    # [S, E]
            vv = enc_combined[bi * SRC_LEN:(bi + 1) * SRC_LEN, :]  # [S, E]
            energy = lax.dot_general(q, kk, (((1,), (1,)), ((), ())),
                                     preferred_element_type=f32)   # [T, S]
            m = jnp.max(energy, axis=-1, keepdims=True)
            e = jnp.exp(energy - m)
            s = jnp.sum(e, axis=-1, keepdims=True)
            p = e * pl.reciprocal(s, approx=True)                  # softmax(src)
            if l == DEC_LAYERS - 1:
                attn_ref[bi * TRG_LEN:(bi + 1) * TRG_LEN, :] = p   # only last layer
            attended_parts.append(
                jnp.dot(p, vv, preferred_element_type=f32))        # [T, E]
        attended = jnp.concatenate(attended_parts, axis=0)         # [B*T, E]
        attended = dense(attended, attn_e2h_w, attn_e2h_b)         # [B*T, H]
        conved = (conved + attended) * SCALE                       # attended_combined
        y = (conved + y) * SCALE                                   # residual
    dec_conved = dense(y, dec_h2e_w, dec_h2e_b)                    # [B*T, E]
    out_ref[...] = dense(dec_conved, fc_w, fc_b)                   # [B*T, V]


# ------------------------------ params & glue --------------------------------
def init_params(key):
    def nrm(k, shape, s=0.1):
        return (s * jax.random.normal(k, shape)).astype(jnp.float32)

    keys = iter(jax.random.split(key, 64))
    p = {
        "enc_tok_emb": nrm(next(keys), (INPUT_DIM, EMB_DIM)),
        "enc_pos_emb": nrm(next(keys), (MAX_LEN, EMB_DIM)),
        "enc_emb2hid_w": nrm(next(keys), (EMB_DIM, HID_DIM)),
        "enc_emb2hid_b": nrm(next(keys), (HID_DIM,)),
        "enc_hid2emb_w": nrm(next(keys), (HID_DIM, EMB_DIM)),
        "enc_hid2emb_b": nrm(next(keys), (EMB_DIM,)),
        "dec_tok_emb": nrm(next(keys), (OUTPUT_DIM, EMB_DIM)),
        "dec_pos_emb": nrm(next(keys), (MAX_LEN, EMB_DIM)),
        "dec_emb2hid_w": nrm(next(keys), (EMB_DIM, HID_DIM)),
        "dec_emb2hid_b": nrm(next(keys), (HID_DIM,)),
        "dec_hid2emb_w": nrm(next(keys), (HID_DIM, EMB_DIM)),
        "dec_hid2emb_b": nrm(next(keys), (EMB_DIM,)),
        "attn_hid2emb_w": nrm(next(keys), (HID_DIM, EMB_DIM)),
        "attn_hid2emb_b": nrm(next(keys), (EMB_DIM,)),
        "attn_emb2hid_w": nrm(next(keys), (EMB_DIM, HID_DIM)),
        "attn_emb2hid_b": nrm(next(keys), (HID_DIM,)),
        "dec_fc_out_w": nrm(next(keys), (EMB_DIM, OUTPUT_DIM)),
        "dec_fc_out_b": nrm(next(keys), (OUTPUT_DIM,)),
    }
    for l in range(ENC_LAYERS):
        p[f"enc_conv{l}_w"] = nrm(next(keys), (KERNEL_SIZE, HID_DIM, H2))
        p[f"enc_conv{l}_b"] = nrm(next(keys), (H2,))
    for l in range(DEC_LAYERS):
        p[f"dec_conv{l}_w"] = nrm(next(keys), (KERNEL_SIZE, HID_DIM, H2))
        p[f"dec_conv{l}_b"] = nrm(next(keys), (H2,))
    return p


def _pack_weights(p):
    """Flat operand tuple in kernel-signature order (conv weights im2col-reshaped)."""
    def b2(v):
        return v.reshape(1, -1)
    enc_conv_w = jnp.stack(
        [p[f"enc_conv{l}_w"].reshape(KH, H2) for l in range(ENC_LAYERS)])
    enc_conv_b = jnp.stack(
        [p[f"enc_conv{l}_b"].reshape(1, H2) for l in range(ENC_LAYERS)])
    dec_conv_w = jnp.stack(
        [p[f"dec_conv{l}_w"].reshape(KH, H2) for l in range(DEC_LAYERS)])
    dec_conv_b = jnp.stack(
        [p[f"dec_conv{l}_b"].reshape(1, H2) for l in range(DEC_LAYERS)])
    return (
        p["enc_emb2hid_w"], b2(p["enc_emb2hid_b"]), enc_conv_w, enc_conv_b,
        p["enc_hid2emb_w"], b2(p["enc_hid2emb_b"]),
        p["dec_emb2hid_w"], b2(p["dec_emb2hid_b"]), dec_conv_w, dec_conv_b,
        p["attn_hid2emb_w"], b2(p["attn_hid2emb_b"]),
        p["attn_emb2hid_w"], b2(p["attn_emb2hid_b"]),
        p["dec_hid2emb_w"], b2(p["dec_hid2emb_b"]),
        p["dec_fc_out_w"], b2(p["dec_fc_out_b"]),
    )


@jax.jit
def seq2seq_forward(p, src, trg):
    # Embedding lookups (gathers) stay in XLA; everything else is one fused kernel.
    enc_embedded = (
        p["enc_tok_emb"][src] + p["enc_pos_emb"][jnp.arange(SRC_LEN)][None]
    ).reshape(B * SRC_LEN, EMB_DIM)
    dec_embedded = (
        p["dec_tok_emb"][trg] + p["dec_pos_emb"][jnp.arange(TRG_LEN)][None]
    ).reshape(B * TRG_LEN, EMB_DIM)

    weights = _pack_weights(p)
    vmem = pl.BlockSpec(memory_space=pltpu.MemorySpace.VMEM)

    out2d, attn2d = pl.pallas_call(
        _seq2seq_fused_kernel,
        out_shape=(
            jax.ShapeDtypeStruct((B * TRG_LEN, OUTPUT_DIM), jnp.float32),
            jax.ShapeDtypeStruct((B * TRG_LEN, SRC_LEN), jnp.float32),
        ),
        in_specs=[vmem] * (2 + len(weights)),
        out_specs=(vmem, vmem),
        scratch_shapes=[
            pltpu.VMEM((B * max(SRC_LEN, TRG_LEN), KH), jnp.float32),  # im2col buf
        ],
    )(enc_embedded, dec_embedded, *weights)

    output = out2d.reshape(B, TRG_LEN, OUTPUT_DIM)
    attention = attn2d.reshape(B, TRG_LEN, SRC_LEN)
    return output, attention


# ---------------------------------- main -------------------------------------
if __name__ == "__main__":
    key = jax.random.PRNGKey(0)
    kp, ks, kt = jax.random.split(key, 3)
    params = init_params(kp)
    src = jax.random.randint(ks, (B, SRC_LEN), 0, INPUT_DIM, dtype=jnp.int32)
    trg = jax.random.randint(kt, (B, TRG_LEN), 0, OUTPUT_DIM, dtype=jnp.int32)

    output, attention = seq2seq_forward(params, src, trg)
    jax.block_until_ready((output, attention))

    assert output.shape == (B, TRG_LEN, OUTPUT_DIM)
    assert attention.shape == (B, TRG_LEN, SRC_LEN)
    assert bool(jnp.all(jnp.isfinite(output))) and bool(jnp.all(jnp.isfinite(attention)))
    print("KERNEL_OK")
</pallas_src>

<mosaic_0001>
module attributes {stable_mosaic.version = 11 : i64} {
  func.func @_seq2seq_fused_kernel(%arg0: memref<16x32xf32, #tpu.memory_space<vmem>>, %arg1: memref<16x32xf32, #tpu.memory_space<vmem>>, %arg2: memref<32x32xf32, #tpu.memory_space<vmem>>, %arg3: memref<1x32xf32, #tpu.memory_space<vmem>>, %arg4: memref<2x96x64xf32, #tpu.memory_space<vmem>>, %arg5: memref<2x1x64xf32, #tpu.memory_space<vmem>>, %arg6: memref<32x32xf32, #tpu.memory_space<vmem>>, %arg7: memref<1x32xf32, #tpu.memory_space<vmem>>, %arg8: memref<32x32xf32, #tpu.memory_space<vmem>>, %arg9: memref<1x32xf32, #tpu.memory_space<vmem>>, %arg10: memref<2x96x64xf32, #tpu.memory_space<vmem>>, %arg11: memref<2x1x64xf32, #tpu.memory_space<vmem>>, %arg12: memref<32x32xf32, #tpu.memory_space<vmem>>, %arg13: memref<1x32xf32, #tpu.memory_space<vmem>>, %arg14: memref<32x32xf32, #tpu.memory_space<vmem>>, %arg15: memref<1x32xf32, #tpu.memory_space<vmem>>, %arg16: memref<32x32xf32, #tpu.memory_space<vmem>>, %arg17: memref<1x32xf32, #tpu.memory_space<vmem>>, %arg18: memref<32x24xf32, #tpu.memory_space<vmem>>, %arg19: memref<1x24xf32, #tpu.memory_space<vmem>>, %arg20: memref<16x24xf32, #tpu.memory_space<vmem>>, %arg21: memref<16x8xf32, #tpu.memory_space<vmem>>, %arg22: memref<16x96xf32, #tpu.memory_space<vmem>>) attributes {dimension_semantics = [], scalar_prefetch = 0 : i64, scratch_operands = 1 : i64, tpu.core_type = #tpu.core_type<tc>} {
    %c0 = arith.constant 0 : index
    %c0_0 = arith.constant 0 : index
    %0 = vector.load %arg0[%c0, %c0_0] : memref<16x32xf32, #tpu.memory_space<vmem>>, vector<16x32xf32>
    %c0_1 = arith.constant 0 : index
    %c0_2 = arith.constant 0 : index
    %1 = vector.load %arg2[%c0_1, %c0_2] : memref<32x32xf32, #tpu.memory_space<vmem>>, vector<32x32xf32>
    %cst = arith.constant dense<0.000000e+00> : vector<16x32xf32>
    %2 = tpu.matmul %0, %1, %cst {dimension_numbers = #tpu.dot_dimension_numbers<[1], [0], [0], [1], [0, 0, 1, 1], [], []>} : vector<16x32xf32>, vector<32x32xf32>, vector<16x32xf32> -> vector<16x32xf32>
    %c0_3 = arith.constant 0 : index
    %c0_4 = arith.constant 0 : index
    %3 = vector.load %arg3[%c0_3, %c0_4] : memref<1x32xf32, #tpu.memory_space<vmem>>, vector<1x32xf32>
    %4 = vector.broadcast %3 : vector<1x32xf32> to vector<16x32xf32>
    %5 = arith.addf %2, %4 : vector<16x32xf32>
    %cst_5 = arith.constant 0.000000e+00 : f32
    %6 = vector.broadcast %cst_5 : f32 to vector<16x96xf32>
    %c0_6 = arith.constant 0 : index
    %c0_7 = arith.constant 0 : index
    %7 = vector.load %arg22[%c0_6, %c0_7] : memref<16x96xf32, #tpu.memory_space<vmem>>, vector<16x96xf32>
    tpu.vector_store %arg22[%c0_6, %c0_7], %6 {strides = array<i32>} : memref<16x96xf32, #tpu.memory_space<vmem>>, vector<16x96xf32>,
    %8 = vector.extract_strided_slice %5 {offsets = [0, 0], sizes = [7, 32], strides = [1, 1]} : vector<16x32xf32> to vector<7x32xf32>
    %c1 = arith.constant 1 : index
    %c0_8 = arith.constant 0 : index
    %9 = vector.load %arg22[%c1, %c0_8] : memref<16x96xf32, #tpu.memory_space<vmem>>, vector<7x32xf32>
    tpu.vector_store %arg22[%c1, %c0_8], %8 {strides = array<i32>} : memref<16x96xf32, #tpu.memory_space<vmem>>, vector<7x32xf32>,
    %10 = vector.extract_strided_slice %5 {offsets = [0, 0], sizes = [8, 32], strides = [1, 1]} : vector<16x32xf32> to vector<8x32xf32>
    %c0_9 = arith.constant 0 : index
    %c32 = arith.constant 32 : index
    %11 = vector.load %arg22[%c0_9, %c32] : memref<16x96xf32, #tpu.memory_space<vmem>>, vector<8x32xf32>
    tpu.vector_store %arg22[%c0_9, %c32], %10 {strides = array<i32>} : memref<16x96xf32, #tpu.memory_space<vmem>>, vector<8x32xf32>,
    %12 = vector.extract_strided_slice %5 {offsets = [1, 0], sizes = [7, 32], strides = [1, 1]} : vector<16x32xf32> to vector<7x32xf32>
    %c0_10 = arith.constant 0 : index
    %c64 = arith.constant 64 : index
    %13 = vector.load %arg22[%c0_10, %c64] : memref<16x96xf32, #tpu.memory_space<vmem>>, vector<7x32xf32>
    tpu.vector_store %arg22[%c0_10, %c64], %12 {strides = array<i32>} : memref<16x96xf32, #tpu.memory_space<vmem>>, vector<7x32xf32>,
    %14 = vector.extract_strided_slice %5 {offsets = [8, 0], sizes = [7, 32], strides = [1, 1]} : vector<16x32xf32> to vector<7x32xf32>
    %c9 = arith.constant 9 : index
    %c0_11 = arith.constant 0 : index
    %15 = vector.load %arg22[%c9, %c0_11] : memref<16x96xf32, #tpu.memory_space<vmem>>, vector<7x32xf32>
    tpu.vector_store %arg22[%c9, %c0_11], %14 {strides = array<i32>} : memref<16x96xf32, #tpu.memory_space<vmem>>, vector<7x32xf32>,
    %16 = vector.extract_strided_slice %5 {offsets = [8, 0], sizes = [8, 32], strides = [1, 1]} : vector<16x32xf32> to vector<8x32xf32>
    %c8 = arith.constant 8 : index
    %c32_12 = arith.constant 32 : index
    %17 = vector.load %arg22[%c8, %c32_12] : memref<16x96xf32, #tpu.memory_space<vmem>>, vector<8x32xf32>
    tpu.vector_store %arg22[%c8, %c32_12], %16 {strides = array<i32>} : memref<16x96xf32, #tpu.memory_space<vmem>>, vector<8x32xf32>,
    %18 = vector.extract_strided_slice %5 {offsets = [9, 0], sizes = [7, 32], strides = [1, 1]} : vector<16x32xf32> to vector<7x32xf32>
    %c8_13 = arith.constant 8 : index
    %c64_14 = arith.constant 64 : index
    %19 = vector.load %arg22[%c8_13, %c64_14] : memref<16x96xf32, #tpu.memory_space<vmem>>, vector<7x32xf32>
    tpu.vector_store %arg22[%c8_13, %c64_14], %18 {strides = array<i32>} : memref<16x96xf32, #tpu.memory_space<vmem>>, vector<7x32xf32>,
    %c0_15 = arith.constant 0 : index
    %c0_16 = arith.constant 0 : index
    %20 = vector.load %arg22[%c0_15, %c0_16] : memref<16x96xf32, #tpu.memory_space<vmem>>, vector<16x96xf32>
    %c0_17 = arith.constant 0 : index
    %c0_18 = arith.constant 0 : index
    %c0_19 = arith.constant 0 : index
    %21 = vector.load %arg4[%c0_17, %c0_18, %c0_19] : memref<2x96x64xf32, #tpu.memory_space<vmem>>, vector<1x96x64xf32>
    %22 = vector.shape_cast %21 : vector<1x96x64xf32> to vector<96x64xf32>
    %cst_20 = arith.constant dense<0.000000e+00> : vector<16x64xf32>
    %23 = tpu.matmul %20, %22, %cst_20 {dimension_numbers = #tpu.dot_dimension_numbers<[1], [0], [0], [1], [0, 0, 1, 1], [], []>} : vector<16x96xf32>, vector<96x64xf32>, vector<16x64xf32> -> vector<16x64xf32>
    %c0_21 = arith.constant 0 : index
    %c0_22 = arith.constant 0 : index
    %c0_23 = arith.constant 0 : index
    %24 = vector.load %arg5[%c0_21, %c0_22, %c0_23] : memref<2x1x64xf32, #tpu.memory_space<vmem>>, vector<1x1x64xf32>
    %25 = vector.shape_cast %24 : vector<1x1x64xf32> to vector<1x64xf32>
    %26 = vector.broadcast %25 : vector<1x64xf32> to vector<16x64xf32>
    %27 = arith.addf %23, %26 : vector<16x64xf32>
    %28 = vector.extract_strided_slice %27 {offsets = [0, 0], sizes = [16, 32], strides = [1, 1]} : vector<16x64xf32> to vector<16x32xf32>
    %29 = vector.extract_strided_slice %27 {offsets = [0, 32], sizes = [16, 32], strides = [1, 1]} : vector<16x64xf32> to vector<16x32xf32>
    %30 = arith.negf %29 : vector<16x32xf32>
    %31 = math.exp %30 : vector<16x32xf32>
    %cst_24 = arith.constant 1.000000e+00 : f32
    %32 = vector.broadcast %cst_24 : f32 to vector<16x32xf32>
    %33 = arith.addf %32, %31 : vector<16x32xf32>
    %34 = arith.divf %32, %33 : vector<16x32xf32>
    %35 = arith.mulf %28, %34 : vector<16x32xf32>
    %36 = arith.addf %35, %5 : vector<16x32xf32>
    %cst_25 = arith.constant 0.707106769 : f32
    %37 = vector.broadcast %cst_25 : f32 to vector<16x32xf32>
    %38 = arith.mulf %36, %37 : vector<16x32xf32>
    %cst_26 = arith.constant 0.000000e+00 : f32
    %39 = vector.broadcast %cst_26 : f32 to vector<16x96xf32>
    %c0_27 = arith.constant 0 : index
    %c0_28 = arith.constant 0 : index
    %40 = vector.load %arg22[%c0_27, %c0_28] : memref<16x96xf32, #tpu.memory_space<vmem>>, vector<16x96xf32>
    tpu.vector_store %arg22[%c0_27, %c0_28], %39 {strides = array<i32>} : memref<16x96xf32, #tpu.memory_space<vmem>>, vector<16x96xf32>,
    %41 = vector.extract_strided_slice %38 {offsets = [0, 0], sizes = [7, 32], strides = [1, 1]} : vector<16x32xf32> to vector<7x32xf32>
    %c1_29 = arith.constant 1 : index
    %c0_30 = arith.constant 0 : index
    %42 = vector.load %arg22[%c1_29, %c0_30] : memref<16x96xf32, #tpu.memory_space<vmem>>, vector<7x32xf32>
    tpu.vector_store %arg22[%c1_29, %c0_30], %41 {strides = array<i32>} : memref<16x96xf32, #tpu.memory_space<vmem>>, vector<7x32xf32>,
    %43 = vector.extract_strided_slice %38 {offsets = [0, 0], sizes = [8, 32], strides = [1, 1]} : vector<16x32xf32> to vector<8x32xf32>
    %c0_31 = arith.constant 0 : index
    %c32_32 = arith.constant 32 : index
    %44 = vector.load %arg22[%c0_31, %c32_32] : memref<16x96xf32, #tpu.memory_space<vmem>>, vector<8x32xf32>
    tpu.vector_store %arg22[%c0_31, %c32_32], %43 {strides = array<i32>} : memref<16x96xf32, #tpu.memory_space<vmem>>, vector<8x32xf32>,
    %45 = vector.extract_strided_slice %38 {offsets = [1, 0], sizes = [7, 32], strides = [1, 1]} : vector<16x32xf32> to vector<7x32xf32>
    %c0_33 = arith.constant 0 : index
    %c64_34 = arith.constant 64 : index
    %46 = vector.load %arg22[%c0_33, %c64_34] : memref<16x96xf32, #tpu.memory_space<vmem>>, vector<7x32xf32>
    tpu.vector_store %arg22[%c0_33, %c64_34], %45 {strides = array<i32>} : memref<16x96xf32, #tpu.memory_space<vmem>>, vector<7x32xf32>,
    %47 = vector.extract_strided_slice %38 {offsets = [8, 0], sizes = [7, 32], strides = [1, 1]} : vector<16x32xf32> to vector<7x32xf32>
    %c9_35 = arith.constant 9 : index
    %c0_36 = arith.constant 0 : index
    %48 = vector.load %arg22[%c9_35, %c0_36] : memref<16x96xf32, #tpu.memory_space<vmem>>, vector<7x32xf32>
    tpu.vector_store %arg22[%c9_35, %c0_36], %47 {strides = array<i32>} : memref<16x96xf32, #tpu.memory_space<vmem>>, vector<7x32xf32>,
    %49 = vector.extract_strided_slice %38 {offsets = [8, 0], sizes = [8, 32], strides = [1, 1]} : vector<16x32xf32> to vector<8x32xf32>
    %c8_37 = arith.constant 8 : index
    %c32_38 = arith.constant 32 : index
    %50 = vector.load %arg22[%c8_37, %c32_38] : memref<16x96xf32, #tpu.memory_space<vmem>>, vector<8x32xf32>
    tpu.vector_store %arg22[%c8_37, %c32_38], %49 {strides = array<i32>} : memref<16x96xf32, #tpu.memory_space<vmem>>, vector<8x32xf32>,
    %51 = vector.extract_strided_slice %38 {offsets = [9, 0], sizes = [7, 32], strides = [1, 1]} : vector<16x32xf32> to vector<7x32xf32>
    %c8_39 = arith.constant 8 : index
    %c64_40 = arith.constant 64 : index
    %52 = vector.load %arg22[%c8_39, %c64_40] : memref<16x96xf32, #tpu.memory_space<vmem>>, vector<7x32xf32>
    tpu.vector_store %arg22[%c8_39, %c64_40], %51 {strides = array<i32>} : memref<16x96xf32, #tpu.memory_space<vmem>>, vector<7x32xf32>,
    %c0_41 = arith.constant 0 : index
    %c0_42 = arith.constant 0 : index
    %53 = vector.load %arg22[%c0_41, %c0_42] : memref<16x96xf32, #tpu.memory_space<vmem>>, vector<16x96xf32>
    %c1_43 = arith.constant 1 : index
    %c0_44 = arith.constant 0 : index
    %c0_45 = arith.constant 0 : index
    %54 = vector.load %arg4[%c1_43, %c0_44, %c0_45] : memref<2x96x64xf32, #tpu.memory_space<vmem>>, vector<1x96x64xf32>
    %55 = vector.shape_cast %54 : vector<1x96x64xf32> to vector<96x64xf32>
    %cst_46 = arith.constant dense<0.000000e+00> : vector<16x64xf32>
    %56 = tpu.matmul %53, %55, %cst_46 {dimension_numbers = #tpu.dot_dimension_numbers<[1], [0], [0], [1], [0, 0, 1, 1], [], []>} : vector<16x96xf32>, vector<96x64xf32>, vector<16x64xf32> -> vector<16x64xf32>
    %c1_47 = arith.constant 1 : index
    %c0_48 = arith.constant 0 : index
    %c0_49 = arith.constant 0 : index
    %57 = vector.load %arg5[%c1_47, %c0_48, %c0_49] : memref<2x1x64xf32, #tpu.memory_space<vmem>>, vector<1x1x64xf32>
    %58 = vector.shape_cast %57 : vector<1x1x64xf32> to vector<1x64xf32>
    %59 = vector.broadcast %58 : vector<1x64xf32> to vector<16x64xf32>
    %60 = arith.addf %56, %59 : vector<16x64xf32>
    %61 = vector.extract_strided_slice %60 {offsets = [0, 0], sizes = [16, 32], strides = [1, 1]} : vector<16x64xf32> to vector<16x32xf32>
    %62 = vector.extract_strided_slice %60 {offsets = [0, 32], sizes = [16, 32], strides = [1, 1]} : vector<16x64xf32> to vector<16x32xf32>
    %63 = arith.negf %62 : vector<16x32xf32>
    %64 = math.exp %63 : vector<16x32xf32>
    %cst_50 = arith.constant 1.000000e+00 : f32
    %65 = vector.broadcast %cst_50 : f32 to vector<16x32xf32>
    %66 = arith.addf %65, %64 : vector<16x32xf32>
    %67 = arith.divf %65, %66 : vector<16x32xf32>
    %68 = arith.mulf %61, %67 : vector<16x32xf32>
    %69 = arith.addf %68, %38 : vector<16x32xf32>
    %cst_51 = arith.constant 0.707106769 : f32
    %70 = vector.broadcast %cst_51 : f32 to vector<16x32xf32>
    %71 = arith.mulf %69, %70 : vector<16x32xf32>
    %c0_52 = arith.constant 0 : index
    %c0_53 = arith.constant 0 : index
    %72 = vector.load %arg6[%c0_52, %c0_53] : memref<32x32xf32, #tpu.memory_space<vmem>>, vector<32x32xf32>
    %cst_54 = arith.constant dense<0.000000e+00> : vector<16x32xf32>
    %73 = tpu.matmul %71, %72, %cst_54 {dimension_numbers = #tpu.dot_dimension_numbers<[1], [0], [0], [1], [0, 0, 1, 1], [], []>} : vector<16x32xf32>, vector<32x32xf32>, vector<16x32xf32> -> vector<16x32xf32>
    %c0_55 = arith.constant 0 : index
    %c0_56 = arith.constant 0 : index
    %74 = vector.load %arg7[%c0_55, %c0_56] : memref<1x32xf32, #tpu.memory_space<vmem>>, vector<1x32xf32>
    %75 = vector.broadcast %74 : vector<1x32xf32> to vector<16x32xf32>
    %76 = arith.addf %73, %75 : vector<16x32xf32>
    %77 = arith.addf %76, %0 : vector<16x32xf32>
    %cst_57 = arith.constant 0.707106769 : f32
    %78 = vector.broadcast %cst_57 : f32 to vector<16x32xf32>
    %79 = arith.mulf %77, %78 : vector<16x32xf32>
    %c0_58 = arith.constant 0 : index
    %c0_59 = arith.constant 0 : index
    %80 = vector.load %arg1[%c0_58, %c0_59] : memref<16x32xf32, #tpu.memory_space<vmem>>, vector<16x32xf32>
    %c0_60 = arith.constant 0 : index
    %c0_61 = arith.constant 0 : index
    %81 = vector.load %arg8[%c0_60, %c0_61] : memref<32x32xf32, #tpu.memory_space<vmem>>, vector<32x32xf32>
    %cst_62 = arith.constant dense<0.000000e+00> : vector<16x32xf32>
    %82 = tpu.matmul %80, %81, %cst_62 {dimension_numbers = #tpu.dot_dimension_numbers<[1], [0], [0], [1], [0, 0, 1, 1], [], []>} : vector<16x32xf32>, vector<32x32xf32>, vector<16x32xf32> -> vector<16x32xf32>
    %c0_63 = arith.constant 0 : index
    %c0_64 = arith.constant 0 : index
    %83 = vector.load %arg9[%c0_63, %c0_64] : memref<1x32xf32, #tpu.memory_space<vmem>>, vector<1x32xf32>
    %84 = vector.broadcast %83 : vector<1x32xf32> to vector<16x32xf32>
    %85 = arith.addf %82, %84 : vector<16x32xf32>
    %cst_65 = arith.constant 0.000000e+00 : f32
    %86 = vector.broadcast %cst_65 : f32 to vector<16x96xf32>
    %c0_66 = arith.constant 0 : index
    %c0_67 = arith.constant 0 : index
    %87 = vector.load %arg22[%c0_66, %c0_67] : memref<16x96xf32, #tpu.memory_space<vmem>>, vector<16x96xf32>
    tpu.vector_store %arg22[%c0_66, %c0_67], %86 {strides = array<i32>} : memref<16x96xf32, #tpu.memory_space<vmem>>, vector<16x96xf32>,
    %88 = vector.extract_strided_slice %85 {offsets = [0, 0], sizes = [6, 32], strides = [1, 1]} : vector<16x32xf32> to vector<6x32xf32>
    %c2 = arith.constant 2 : index
    %c0_68 = arith.constant 0 : index
    %89 = vector.load %arg22[%c2, %c0_68] : memref<16x96xf32, #tpu.memory_space<vmem>>, vector<6x32xf32>
    tpu.vector_store %arg22[%c2, %c0_68], %88 {strides = array<i32>} : memref<16x96xf32, #tpu.memory_space<vmem>>, vector<6x32xf32>,
    %90 = vector.extract_strided_slice %85 {offsets = [0, 0], sizes = [7, 32], strides = [1, 1]} : vector<16x32xf32> to vector<7x32xf32>
    %c1_69 = arith.constant 1 : index
    %c32_70 = arith.constant 32 : index
    %91 = vector.load %arg22[%c1_69, %c32_70] : memref<16x96xf32, #tpu.memory_space<vmem>>, vector<7x32xf32>
    tpu.vector_store %arg22[%c1_69, %c32_70], %90 {strides = array<i32>} : memref<16x96xf32, #tpu.memory_space<vmem>>, vector<7x32xf32>,
    %92 = vector.extract_strided_slice %85 {offsets = [0, 0], sizes = [8, 32], strides = [1, 1]} : vector<16x32xf32> to vector<8x32xf32>
    %c0_71 = arith.constant 0 : index
    %c64_72 = arith.constant 64 : index
    %93 = vector.load %arg22[%c0_71, %c64_72] : memref<16x96xf32, #tpu.memory_space<vmem>>, vector<8x32xf32>
    tpu.vector_store %arg22[%c0_71, %c64_72], %92 {strides = array<i32>} : memref<16x96xf32, #tpu.memory_space<vmem>>, vector<8x32xf32>,
    %94 = vector.extract_strided_slice %85 {offsets = [8, 0], sizes = [6, 32], strides = [1, 1]} : vector<16x32xf32> to vector<6x32xf32>
    %c10 = arith.constant 10 : index
    %c0_73 = arith.constant 0 : index
    %95 = vector.load %arg22[%c10, %c0_73] : memref<16x96xf32, #tpu.memory_space<vmem>>, vector<6x32xf32>
    tpu.vector_store %arg22[%c10, %c0_73], %94 {strides = array<i32>} : memref<16x96xf32, #tpu.memory_space<vmem>>, vector<6x32xf32>,
    %96 = vector.extract_strided_slice %85 {offsets = [8, 0], sizes = [7, 32], strides = [1, 1]} : vector<16x32xf32> to vector<7x32xf32>
    %c9_74 = arith.constant 9 : index
    %c32_75 = arith.constant 32 : index
    %97 = vector.load %arg22[%c9_74, %c32_75] : memref<16x96xf32, #tpu.memory_space<vmem>>, vector<7x32xf32>
    tpu.vector_store %arg22[%c9_74, %c32_75], %96 {strides = array<i32>} : memref<16x96xf32, #tpu.memory_space<vmem>>, vector<7x32xf32>,
    %98 = vector.extract_strided_slice %85 {offsets = [8, 0], sizes = [8, 32], strides = [1, 1]} : vector<16x32xf32> to vector<8x32xf32>
    %c8_76 = arith.constant 8 : index
    %c64_77 = arith.constant 64 : index
    %99 = vector.load %arg22[%c8_76, %c64_77] : memref<16x96xf32, #tpu.memory_space<vmem>>, vector<8x32xf32>
    tpu.vector_store %arg22[%c8_76, %c64_77], %98 {strides = array<i32>} : memref<16x96xf32, #tpu.memory_space<vmem>>, vector<8x32xf32>,
    %c0_78 = arith.constant 0 : index
    %c0_79 = arith.constant 0 : index
    %100 = vector.load %arg22[%c0_78, %c0_79] : memref<16x96xf32, #tpu.memory_space<vmem>>, vector<16x96xf32>
    %c0_80 = arith.constant 0 : index
    %c0_81 = arith.constant 0 : index
    %c0_82 = arith.constant 0 : index
    %101 = vector.load %arg10[%c0_80, %c0_81, %c0_82] : memref<2x96x64xf32, #tpu.memory_space<vmem>>, vector<1x96x64xf32>
    %102 = vector.shape_cast %101 : vector<1x96x64xf32> to vector<96x64xf32>
    %cst_83 = arith.constant dense<0.000000e+00> : vector<16x64xf32>
    %103 = tpu.matmul %100, %102, %cst_83 {dimension_numbers = #tpu.dot_dimension_numbers<[1], [0], [0], [1], [0, 0, 1, 1], [], []>} : vector<16x96xf32>, vector<96x64xf32>, vector<16x64xf32> -> vector<16x64xf32>
    %c0_84 = arith.constant 0 : index
    %c0_85 = arith.constant 0 : index
    %c0_86 = arith.constant 0 : index
    %104 = vector.load %arg11[%c0_84, %c0_85, %c0_86] : memref<2x1x64xf32, #tpu.memory_space<vmem>>, vector<1x1x64xf32>
    %105 = vector.shape_cast %104 : vector<1x1x64xf32> to vector<1x64xf32>
    %106 = vector.broadcast %105 : vector<1x64xf32> to vector<16x64xf32>
    %107 = arith.addf %103, %106 : vector<16x64xf32>
    %108 = vector.extract_strided_slice %107 {offsets = [0, 0], sizes = [16, 32], strides = [1, 1]} : vector<16x64xf32> to vector<16x32xf32>
    %109 = vector.extract_strided_slice %107 {offsets = [0, 32], sizes = [16, 32], strides = [1, 1]} : vector<16x64xf32> to vector<16x32xf32>
    %110 = arith.negf %109 : vector<16x32xf32>
    %111 = math.exp %110 : vector<16x32xf32>
    %cst_87 = arith.constant 1.000000e+00 : f32
    %112 = vector.broadcast %cst_87 : f32 to vector<16x32xf32>
    %113 = arith.addf %112, %111 : vector<16x32xf32>
    %114 = arith.divf %112, %113 : vector<16x32xf32>
    %115 = arith.mulf %108, %114 : vector<16x32xf32>
    %c0_88 = arith.constant 0 : index
    %c0_89 = arith.constant 0 : index
    %116 = vector.load %arg12[%c0_88, %c0_89] : memref<32x32xf32, #tpu.memory_space<vmem>>, vector<32x32xf32>
    %cst_90 = arith.constant dense<0.000000e+00> : vector<16x32xf32>
    %117 = tpu.matmul %115, %116, %cst_90 {dimension_numbers = #tpu.dot_dimension_numbers<[1], [0], [0], [1], [0, 0, 1, 1], [], []>} : vector<16x32xf32>, vector<32x32xf32>, vector<16x32xf32> -> vector<16x32xf32>
    %c0_91 = arith.constant 0 : index
    %c0_92 = arith.constant 0 : index
    %118 = vector.load %arg13[%c0_91, %c0_92] : memref<1x32xf32, #tpu.memory_space<vmem>>, vector<1x32xf32>
    %119 = vector.broadcast %118 : vector<1x32xf32> to vector<16x32xf32>
    %120 = arith.addf %117, %119 : vector<16x32xf32>
    %121 = arith.addf %120, %80 : vector<16x32xf32>
    %cst_93 = arith.constant 0.707106769 : f32
    %122 = vector.broadcast %cst_93 : f32 to vector<16x32xf32>
    %123 = arith.mulf %121, %122 : vector<16x32xf32>
    %124 = vector.extract_strided_slice %123 {offsets = [0, 0], sizes = [8, 32], strides = [1, 1]} : vector<16x32xf32> to vector<8x32xf32>
    %125 = vector.extract_strided_slice %76 {offsets = [0, 0], sizes = [8, 32], strides = [1, 1]} : vector<16x32xf32> to vector<8x32xf32>
    %126 = vector.extract_strided_slice %79 {offsets = [0, 0], sizes = [8, 32], strides = [1, 1]} : vector<16x32xf32> to vector<8x32xf32>
    %cst_94 = arith.constant dense<0.000000e+00> : vector<8x8xf32>
    %127 = tpu.matmul %124, %125, %cst_94 {dimension_numbers = #tpu.dot_dimension_numbers<[1], [1], [0], [0], [0, 0, 1, 0], [], []>} : vector<8x32xf32>, vector<8x32xf32>, vector<8x8xf32> -> vector<8x8xf32>
    %cst_95 = arith.constant dense<0xFF800000> : vector<8xf32>
    %128 = vector.multi_reduction <maximumf>, %127, %cst_95 [1] : vector<8x8xf32> to vector<8xf32>
    %129 = vector.shape_cast %128 : vector<8xf32> to vector<8x1xf32>
    %130 = vector.broadcast %129 : vector<8x1xf32> to vector<8x8xf32>
    %131 = arith.subf %127, %130 : vector<8x8xf32>
    %132 = math.exp %131 : vector<8x8xf32>
    %cst_96 = arith.constant dense<0.000000e+00> : vector<8xf32>
    %133 = vector.multi_reduction <add>, %132, %cst_96 [1] : vector<8x8xf32> to vector<8xf32>
    %134 = vector.shape_cast %133 : vector<8xf32> to vector<8x1xf32>
    %135 = tpu.reciprocal %134 {approx = true} : vector<8x1xf32> -> vector<8x1xf32>
    %136 = vector.broadcast %135 : vector<8x1xf32> to vector<8x8xf32>
    %137 = arith.mulf %132, %136 : vector<8x8xf32>
    %cst_97 = arith.constant dense<0.000000e+00> : vector<8x32xf32>
    %138 = tpu.matmul %137, %126, %cst_97 {dimension_numbers = #tpu.dot_dimension_numbers<[1], [0], [0], [1], [0, 0, 1, 1], [], []>} : vector<8x8xf32>, vector<8x32xf32>, vector<8x32xf32> -> vector<8x32xf32>
    %139 = vector.extract_strided_slice %123 {offsets = [8, 0], sizes = [8, 32], strides = [1, 1]} : vector<16x32xf32> to vector<8x32xf32>
    %140 = vector.extract_strided_slice %76 {offsets = [8, 0], sizes = [8, 32], strides = [1, 1]} : vector<16x32xf32> to vector<8x32xf32>
    %141 = vector.extract_strided_slice %79 {offsets = [8, 0], sizes = [8, 32], strides = [1, 1]} : vector<16x32xf32> to vector<8x32xf32>
    %cst_98 = arith.constant dense<0.000000e+00> : vector<8x8xf32>
    %142 = tpu.matmul %139, %140, %cst_98 {dimension_numbers = #tpu.dot_dimension_numbers<[1], [1], [0], [0], [0, 0, 1, 0], [], []>} : vector<8x32xf32>, vector<8x32xf32>, vector<8x8xf32> -> vector<8x8xf32>
    %cst_99 = arith.constant dense<0xFF800000> : vector<8xf32>
    %143 = vector.multi_reduction <maximumf>, %142, %cst_99 [1] : vector<8x8xf32> to vector<8xf32>
    %144 = vector.shape_cast %143 : vector<8xf32> to vector<8x1xf32>
    %145 = vector.broadcast %144 : vector<8x1xf32> to vector<8x8xf32>
    %146 = arith.subf %142, %145 : vector<8x8xf32>
    %147 = math.exp %146 : vector<8x8xf32>
    %cst_100 = arith.constant dense<0.000000e+00> : vector<8xf32>
    %148 = vector.multi_reduction <add>, %147, %cst_100 [1] : vector<8x8xf32> to vector<8xf32>
    %149 = vector.shape_cast %148 : vector<8xf32> to vector<8x1xf32>
    %150 = tpu.reciprocal %149 {approx = true} : vector<8x1xf32> -> vector<8x1xf32>
    %151 = vector.broadcast %150 : vector<8x1xf32> to vector<8x8xf32>
    %152 = arith.mulf %147, %151 : vector<8x8xf32>
    %cst_101 = arith.constant dense<0.000000e+00> : vector<8x32xf32>
    %153 = tpu.matmul %152, %141, %cst_101 {dimension_numbers = #tpu.dot_dimension_numbers<[1], [0], [0], [1], [0, 0, 1, 1], [], []>} : vector<8x8xf32>, vector<8x32xf32>, vector<8x32xf32> -> vector<8x32xf32>
    %154 = tpu.concatenate %138, %153 in 0 : vector<8x32xf32>, vector<8x32xf32> -> vector<16x32xf32>
    %c0_102 = arith.constant 0 : index
    %c0_103 = arith.constant 0 : index
    %155 = vector.load %arg14[%c0_102, %c0_103] : memref<32x32xf32, #tpu.memory_space<vmem>>, vector<32x32xf32>
    %cst_104 = arith.constant dense<0.000000e+00> : vector<16x32xf32>
    %156 = tpu.matmul %154, %155, %cst_104 {dimension_numbers = #tpu.dot_dimension_numbers<[1], [0], [0], [1], [0, 0, 1, 1], [], []>} : vector<16x32xf32>, vector<32x32xf32>, vector<16x32xf32> -> vector<16x32xf32>
    %c0_105 = arith.constant 0 : index
    %c0_106 = arith.constant 0 : index
    %157 = vector.load %arg15[%c0_105, %c0_106] : memref<1x32xf32, #tpu.memory_space<vmem>>, vector<1x32xf32>
    %158 = vector.broadcast %157 : vector<1x32xf32> to vector<16x32xf32>
    %159 = arith.addf %156, %158 : vector<16x32xf32>
    %160 = arith.addf %115, %159 : vector<16x32xf32>
    %cst_107 = arith.constant 0.707106769 : f32
    %161 = vector.broadcast %cst_107 : f32 to vector<16x32xf32>
    %162 = arith.mulf %160, %161 : vector<16x32xf32>
    %163 = arith.addf %162, %85 : vector<16x32xf32>
    %cst_108 = arith.constant 0.707106769 : f32
    %164 = vector.broadcast %cst_108 : f32 to vector<16x32xf32>
    %165 = arith.mulf %163, %164 : vector<16x32xf32>
    %cst_109 = arith.constant 0.000000e+00 : f32
    %166 = vector.broadcast %cst_109 : f32 to vector<16x96xf32>
    %c0_110 = arith.constant 0 : index
    %c0_111 = arith.constant 0 : index
    %167 = vector.load %arg22[%c0_110, %c0_111] : memref<16x96xf32, #tpu.memory_space<vmem>>, vector<16x96xf32>
    tpu.vector_store %arg22[%c0_110, %c0_111], %166 {strides = array<i32>} : memref<16x96xf32, #tpu.memory_space<vmem>>, vector<16x96xf32>,
    %168 = vector.extract_strided_slice %165 {offsets = [0, 0], sizes = [6, 32], strides = [1, 1]} : vector<16x32xf32> to vector<6x32xf32>
    %c2_112 = arith.constant 2 : index
    %c0_113 = arith.constant 0 : index
    %169 = vector.load %arg22[%c2_112, %c0_113] : memref<16x96xf32, #tpu.memory_space<vmem>>, vector<6x32xf32>
    tpu.vector_store %arg22[%c2_112, %c0_113], %168 {strides = array<i32>} : memref<16x96xf32, #tpu.memory_space<vmem>>, vector<6x32xf32>,
    %170 = vector.extract_strided_slice %165 {offsets = [0, 0], sizes = [7, 32], strides = [1, 1]} : vector<16x32xf32> to vector<7x32xf32>
    %c1_114 = arith.constant 1 : index
    %c32_115 = arith.constant 32 : index
    %171 = vector.load %arg22[%c1_114, %c32_115] : memref<16x96xf32, #tpu.memory_space<vmem>>, vector<7x32xf32>
    tpu.vector_store %arg22[%c1_114, %c32_115], %170 {strides = array<i32>} : memref<16x96xf32, #tpu.memory_space<vmem>>, vector<7x32xf32>,
    %172 = vector.extract_strided_slice %165 {offsets = [0, 0], sizes = [8, 32], strides = [1, 1]} : vector<16x32xf32> to vector<8x32xf32>
    %c0_116 = arith.constant 0 : index
    %c64_117 = arith.constant 64 : index
    %173 = vector.load %arg22[%c0_116, %c64_117] : memref<16x96xf32, #tpu.memory_space<vmem>>, vector<8x32xf32>
    tpu.vector_store %arg22[%c0_116, %c64_117], %172 {strides = array<i32>} : memref<16x96xf32, #tpu.memory_space<vmem>>, vector<8x32xf32>,
    %174 = vector.extract_strided_slice %165 {offsets = [8, 0], sizes = [6, 32], strides = [1, 1]} : vector<16x32xf32> to vector<6x32xf32>
    %c10_118 = arith.constant 10 : index
    %c0_119 = arith.constant 0 : index
    %175 = vector.load %arg22[%c10_118, %c0_119] : memref<16x96xf32, #tpu.memory_space<vmem>>, vector<6x32xf32>
    tpu.vector_store %arg22[%c10_118, %c0_119], %174 {strides = array<i32>} : memref<16x96xf32, #tpu.memory_space<vmem>>, vector<6x32xf32>,
    %176 = vector.extract_strided_slice %165 {offsets = [8, 0], sizes = [7, 32], strides = [1, 1]} : vector<16x32xf32> to vector<7x32xf32>
    %c9_120 = arith.constant 9 : index
    %c32_121 = arith.constant 32 : index
    %177 = vector.load %arg22[%c9_120, %c32_121] : memref<16x96xf32, #tpu.memory_space<vmem>>, vector<7x32xf32>
    tpu.vector_store %arg22[%c9_120, %c32_121], %176 {strides = array<i32>} : memref<16x96xf32, #tpu.memory_space<vmem>>, vector<7x32xf32>,
    %178 = vector.extract_strided_slice %165 {offsets = [8, 0], sizes = [8, 32], strides = [1, 1]} : vector<16x32xf32> to vector<8x32xf32>
    %c8_122 = arith.constant 8 : index
    %c64_123 = arith.constant 64 : index
    %179 = vector.load %arg22[%c8_122, %c64_123] : memref<16x96xf32, #tpu.memory_space<vmem>>, vector<8x32xf32>
    tpu.vector_store %arg22[%c8_122, %c64_123], %178 {strides = array<i32>} : memref<16x96xf32, #tpu.memory_space<vmem>>, vector<8x32xf32>,
    %c0_124 = arith.constant 0 : index
    %c0_125 = arith.constant 0 : index
    %180 = vector.load %arg22[%c0_124, %c0_125] : memref<16x96xf32, #tpu.memory_space<vmem>>, vector<16x96xf32>
    %c1_126 = arith.constant 1 : index
    %c0_127 = arith.constant 0 : index
    %c0_128 = arith.constant 0 : index
    %181 = vector.load %arg10[%c1_126, %c0_127, %c0_128] : memref<2x96x64xf32, #tpu.memory_space<vmem>>, vector<1x96x64xf32>
    %182 = vector.shape_cast %181 : vector<1x96x64xf32> to vector<96x64xf32>
    %cst_129 = arith.constant dense<0.000000e+00> : vector<16x64xf32>
    %183 = tpu.matmul %180, %182, %cst_129 {dimension_numbers = #tpu.dot_dimension_numbers<[1], [0], [0], [1], [0, 0, 1, 1], [], []>} : vector<16x96xf32>, vector<96x64xf32>, vector<16x64xf32> -> vector<16x64xf32>
    %c1_130 = arith.constant 1 : index
    %c0_131 = arith.constant 0 : index
    %c0_132 = arith.constant 0 : index
    %184 = vector.load %arg11[%c1_130, %c0_131, %c0_132] : memref<2x1x64xf32, #tpu.memory_space<vmem>>, vector<1x1x64xf32>
    %185 = vector.shape_cast %184 : vector<1x1x64xf32> to vector<1x64xf32>
    %186 = vector.broadcast %185 : vector<1x64xf32> to vector<16x64xf32>
    %187 = arith.addf %183, %186 : vector<16x64xf32>
    %188 = vector.extract_strided_slice %187 {offsets = [0, 0], sizes = [16, 32], strides = [1, 1]} : vector<16x64xf32> to vector<16x32xf32>
    %189 = vector.extract_strided_slice %187 {offsets = [0, 32], sizes = [16, 32], strides = [1, 1]} : vector<16x64xf32> to vector<16x32xf32>
    %190 = arith.negf %189 : vector<16x32xf32>
    %191 = math.exp %190 : vector<16x32xf32>
    %cst_133 = arith.constant 1.000000e+00 : f32
    %192 = vector.broadcast %cst_133 : f32 to vector<16x32xf32>
    %193 = arith.addf %192, %191 : vector<16x32xf32>
    %194 = arith.divf %192, %193 : vector<16x32xf32>
    %195 = arith.mulf %188, %194 : vector<16x32xf32>
    %c0_134 = arith.constant 0 : index
    %c0_135 = arith.constant 0 : index
    %196 = vector.load %arg12[%c0_134, %c0_135] : memref<32x32xf32, #tpu.memory_space<vmem>>, vector<32x32xf32>
    %cst_136 = arith.constant dense<0.000000e+00> : vector<16x32xf32>
    %197 = tpu.matmul %195, %196, %cst_136 {dimension_numbers = #tpu.dot_dimension_numbers<[1], [0], [0], [1], [0, 0, 1, 1], [], []>} : vector<16x32xf32>, vector<32x32xf32>, vector<16x32xf32> -> vector<16x32xf32>
    %c0_137 = arith.constant 0 : index
    %c0_138 = arith.constant 0 : index
    %198 = vector.load %arg13[%c0_137, %c0_138] : memref<1x32xf32, #tpu.memory_space<vmem>>, vector<1x32xf32>
    %199 = vector.broadcast %198 : vector<1x32xf32> to vector<16x32xf32>
    %200 = arith.addf %197, %199 : vector<16x32xf32>
    %201 = arith.addf %200, %80 : vector<16x32xf32>
    %cst_139 = arith.constant 0.707106769 : f32
    %202 = vector.broadcast %cst_139 : f32 to vector<16x32xf32>
    %203 = arith.mulf %201, %202 : vector<16x32xf32>
    %204 = vector.extract_strided_slice %203 {offsets = [0, 0], sizes = [8, 32], strides = [1, 1]} : vector<16x32xf32> to vector<8x32xf32>
    %205 = vector.extract_strided_slice %76 {offsets = [0, 0], sizes = [8, 32], strides = [1, 1]} : vector<16x32xf32> to vector<8x32xf32>
    %206 = vector.extract_strided_slice %79 {offsets = [0, 0], sizes = [8, 32], strides = [1, 1]} : vector<16x32xf32> to vector<8x32xf32>
    %cst_140 = arith.constant dense<0.000000e+00> : vector<8x8xf32>
    %207 = tpu.matmul %204, %205, %cst_140 {dimension_numbers = #tpu.dot_dimension_numbers<[1], [1], [0], [0], [0, 0, 1, 0], [], []>} : vector<8x32xf32>, vector<8x32xf32>, vector<8x8xf32> -> vector<8x8xf32>
    %cst_141 = arith.constant dense<0xFF800000> : vector<8xf32>
    %208 = vector.multi_reduction <maximumf>, %207, %cst_141 [1] : vector<8x8xf32> to vector<8xf32>
    %209 = vector.shape_cast %208 : vector<8xf32> to vector<8x1xf32>
    %210 = vector.broadcast %209 : vector<8x1xf32> to vector<8x8xf32>
    %211 = arith.subf %207, %210 : vector<8x8xf32>
    %212 = math.exp %211 : vector<8x8xf32>
    %cst_142 = arith.constant dense<0.000000e+00> : vector<8xf32>
    %213 = vector.multi_reduction <add>, %212, %cst_142 [1] : vector<8x8xf32> to vector<8xf32>
    %214 = vector.shape_cast %213 : vector<8xf32> to vector<8x1xf32>
    %215 = tpu.reciprocal %214 {approx = true} : vector<8x1xf32> -> vector<8x1xf32>
    %216 = vector.broadcast %215 : vector<8x1xf32> to vector<8x8xf32>
    %217 = arith.mulf %212, %216 : vector<8x8xf32>
    %c0_143 = arith.constant 0 : index
    %c0_144 = arith.constant 0 : index
    %218 = vector.load %arg21[%c0_143, %c0_144] : memref<16x8xf32, #tpu.memory_space<vmem>>, vector<8x8xf32>
    tpu.vector_store %arg21[%c0_143, %c0_144], %217 {strides = array<i32>} : memref<16x8xf32, #tpu.memory_space<vmem>>, vector<8x8xf32>,
    %cst_145 = arith.constant dense<0.000000e+00> : vector<8x32xf32>
    %219 = tpu.matmul %217, %206, %cst_145 {dimension_numbers = #tpu.dot_dimension_numbers<[1], [0], [0], [1], [0, 0, 1, 1], [], []>} : vector<8x8xf32>, vector<8x32xf32>, vector<8x32xf32> -> vector<8x32xf32>
    %220 = vector.extract_strided_slice %203 {offsets = [8, 0], sizes = [8, 32], strides = [1, 1]} : vector<16x32xf32> to vector<8x32xf32>
    %221 = vector.extract_strided_slice %76 {offsets = [8, 0], sizes = [8, 32], strides = [1, 1]} : vector<16x32xf32> to vector<8x32xf32>
    %222 = vector.extract_strided_slice %79 {offsets = [8, 0], sizes = [8, 32], strides = [1, 1]} : vector<16x32xf32> to vector<8x32xf32>
    %cst_146 = arith.constant dense<0.000000e+00> : vector<8x8xf32>
    %223 = tpu.matmul %220, %221, %cst_146 {dimension_numbers = #tpu.dot_dimension_numbers<[1], [1], [0], [0], [0, 0, 1, 0], [], []>} : vector<8x32xf32>, vector<8x32xf32>, vector<8x8xf32> -> vector<8x8xf32>
    %cst_147 = arith.constant dense<0xFF800000> : vector<8xf32>
    %224 = vector.multi_reduction <maximumf>, %223, %cst_147 [1] : vector<8x8xf32> to vector<8xf32>
    %225 = vector.shape_cast %224 : vector<8xf32> to vector<8x1xf32>
    %226 = vector.broadcast %225 : vector<8x1xf32> to vector<8x8xf32>
    %227 = arith.subf %223, %226 : vector<8x8xf32>
    %228 = math.exp %227 : vector<8x8xf32>
    %cst_148 = arith.constant dense<0.000000e+00> : vector<8xf32>
    %229 = vector.multi_reduction <add>, %228, %cst_148 [1] : vector<8x8xf32> to vector<8xf32>
    %230 = vector.shape_cast %229 : vector<8xf32> to vector<8x1xf32>
    %231 = tpu.reciprocal %230 {approx = true} : vector<8x1xf32> -> vector<8x1xf32>
    %232 = vector.broadcast %231 : vector<8x1xf32> to vector<8x8xf32>
    %233 = arith.mulf %228, %232 : vector<8x8xf32>
    %c8_149 = arith.constant 8 : index
    %c0_150 = arith.constant 0 : index
    %234 = vector.load %arg21[%c8_149, %c0_150] : memref<16x8xf32, #tpu.memory_space<vmem>>, vector<8x8xf32>
    tpu.vector_store %arg21[%c8_149, %c0_150], %233 {strides = array<i32>} : memref<16x8xf32, #tpu.memory_space<vmem>>, vector<8x8xf32>,
    %cst_151 = arith.constant dense<0.000000e+00> : vector<8x32xf32>
    %235 = tpu.matmul %233, %222, %cst_151 {dimension_numbers = #tpu.dot_dimension_numbers<[1], [0], [0], [1], [0, 0, 1, 1], [], []>} : vector<8x8xf32>, vector<8x32xf32>, vector<8x32xf32> -> vector<8x32xf32>
    %236 = tpu.concatenate %219, %235 in 0 : vector<8x32xf32>, vector<8x32xf32> -> vector<16x32xf32>
    %c0_152 = arith.constant 0 : index
    %c0_153 = arith.constant 0 : index
    %237 = vector.load %arg14[%c0_152, %c0_153] : memref<32x32xf32, #tpu.memory_space<vmem>>, vector<32x32xf32>
    %cst_154 = arith.constant dense<0.000000e+00> : vector<16x32xf32>
    %238 = tpu.matmul %236, %237, %cst_154 {dimension_numbers = #tpu.dot_dimension_numbers<[1], [0], [0], [1], [0, 0, 1, 1], [], []>} : vector<16x32xf32>, vector<32x32xf32>, vector<16x32xf32> -> vector<16x32xf32>
    %c0_155 = arith.constant 0 : index
    %c0_156 = arith.constant 0 : index
    %239 = vector.load %arg15[%c0_155, %c0_156] : memref<1x32xf32, #tpu.memory_space<vmem>>, vector<1x32xf32>
    %240 = vector.broadcast %239 : vector<1x32xf32> to vector<16x32xf32>
    %241 = arith.addf %238, %240 : vector<16x32xf32>
    %242 = arith.addf %195, %241 : vector<16x32xf32>
    %cst_157 = arith.constant 0.707106769 : f32
    %243 = vector.broadcast %cst_157 : f32 to vector<16x32xf32>
    %244 = arith.mulf %242, %243 : vector<16x32xf32>
    %245 = arith.addf %244, %165 : vector<16x32xf32>
    %cst_158 = arith.constant 0.707106769 : f32
    %246 = vector.broadcast %cst_158 : f32 to vector<16x32xf32>
    %247 = arith.mulf %245, %246 : vector<16x32xf32>
    %c0_159 = arith.constant 0 : index
    %c0_160 = arith.constant 0 : index
    %248 = vector.load %arg16[%c0_159, %c0_160] : memref<32x32xf32, #tpu.memory_space<vmem>>, vector<32x32xf32>
    %cst_161 = arith.constant dense<0.000000e+00> : vector<16x32xf32>
    %249 = tpu.matmul %247, %248, %cst_161 {dimension_numbers = #tpu.dot_dimension_numbers<[1], [0], [0], [1], [0, 0, 1, 1], [], []>} : vector<16x32xf32>, vector<32x32xf32>, vector<16x32xf32> -> vector<16x32xf32>
    %c0_162 = arith.constant 0 : index
    %c0_163 = arith.constant 0 : index
    %250 = vector.load %arg17[%c0_162, %c0_163] : memref<1x32xf32, #tpu.memory_space<vmem>>, vector<1x32xf32>
    %251 = vector.broadcast %250 : vector<1x32xf32> to vector<16x32xf32>
    %252 = arith.addf %249, %251 : vector<16x32xf32>
    %c0_164 = arith.constant 0 : index
    %c0_165 = arith.constant 0 : index
    %253 = vector.load %arg18[%c0_164, %c0_165] : memref<32x24xf32, #tpu.memory_space<vmem>>, vector<32x24xf32>
    %cst_166 = arith.constant dense<0.000000e+00> : vector<16x24xf32>
    %254 = tpu.matmul %252, %253, %cst_166 {dimension_numbers = #tpu.dot_dimension_numbers<[1], [0], [0], [1], [0, 0, 1, 1], [], []>} : vector<16x32xf32>, vector<32x24xf32>, vector<16x24xf32> -> vector<16x24xf32>
    %c0_167 = arith.constant 0 : index
    %c0_168 = arith.constant 0 : index
    %255 = vector.load %arg19[%c0_167, %c0_168] : memref<1x24xf32, #tpu.memory_space<vmem>>, vector<1x24xf32>
    %256 = vector.broadcast %255 : vector<1x24xf32> to vector<16x24xf32>
    %257 = arith.addf %254, %256 : vector<16x24xf32>
    %c0_169 = arith.constant 0 : index
    %c0_170 = arith.constant 0 : index
    %258 = vector.load %arg20[%c0_169, %c0_170] : memref<16x24xf32, #tpu.memory_space<vmem>>, vector<16x24xf32>
    tpu.vector_store %arg20[%c0_169, %c0_170], %257 {strides = array<i32>} : memref<16x24xf32, #tpu.memory_space<vmem>>, vector<16x24xf32>,
    return
  }
}

</mosaic_0001>

<llo_original>
// kernel: seq2seq_forward.1
$region0: #{seq2seq_forward.1}
  #allocation0 [shape = 'u32[]', space=smem, size = 0x4, offset = 0x4, fixed_abs, tag = 'smem constant byte address 0x4 - core index']
  #allocation1 [shape = 'u32[144,128]{1,0:T(1,128)}', space=vmem, size = 0x12000, scoped, tag = 'internal scratch']
  #allocation2 [shape = 'f32[16,96]{1,0:T(8,128)}', space=vmem, size = 0x2000, scoped, tag = 'scratch operand']
  %s0 = inlined_call_operand.vmem [shape: f32[16,32], index: 0, kind: input, shape index: {}]
  %s1 = inlined_call_operand.vmem [shape: f32[16,32], index: 1, kind: input, shape index: {}]
  %s2 = inlined_call_operand.vmem [shape: f32[32,32], index: 2, kind: input, shape index: {}]
  %s3 = inlined_call_operand.vmem [shape: f32[1,32], index: 3, kind: input, shape index: {}]
  %s4 = inlined_call_operand.vmem [shape: f32[2,96,64], index: 4, kind: input, shape index: {}]
  %s5 = inlined_call_operand.vmem [shape: f32[2,1,64], index: 5, kind: input, shape index: {}]
  %s6 = inlined_call_operand.vmem [shape: f32[32,32], index: 6, kind: input, shape index: {}]
  %s7 = inlined_call_operand.vmem [shape: f32[1,32], index: 7, kind: input, shape index: {}]
  %s8 = inlined_call_operand.vmem [shape: f32[32,32], index: 8, kind: input, shape index: {}]
  %s9 = inlined_call_operand.vmem [shape: f32[1,32], index: 9, kind: input, shape index: {}]
  %s10 = inlined_call_operand.vmem [shape: f32[2,96,64], index: 10, kind: input, shape index: {}]
  %s11 = inlined_call_operand.vmem [shape: f32[2,1,64], index: 11, kind: input, shape index: {}]
  %s12 = inlined_call_operand.vmem [shape: f32[32,32], index: 12, kind: input, shape index: {}]
  %s13 = inlined_call_operand.vmem [shape: f32[1,32], index: 13, kind: input, shape index: {}]
  %s14 = inlined_call_operand.vmem [shape: f32[32,32], index: 14, kind: input, shape index: {}]
  %s15 = inlined_call_operand.vmem [shape: f32[1,32], index: 15, kind: input, shape index: {}]
  %s16 = inlined_call_operand.vmem [shape: f32[32,32], index: 16, kind: input, shape index: {}]
  %s17 = inlined_call_operand.vmem [shape: f32[1,32], index: 17, kind: input, shape index: {}]
  %s18 = inlined_call_operand.vmem [shape: f32[32,24], index: 18, kind: input, shape index: {}]
  %s19 = inlined_call_operand.vmem [shape: f32[1,24], index: 19, kind: input, shape index: {}]
  %s20 = inlined_call_operand.hbm [shape: f32[16,24], index: 20, kind: output, shape index: {0}]
  %s21 = inlined_call_operand.hbm [shape: f32[16,8], index: 21, kind: output, shape index: {1}]
  %22 = xla_tuple %s20, %s21
  %s23 = sld [smem:[#allocation0]]
  $region98: #{seq2seq_forward.1} parent=0
    _
  %s25 = ssub.s32 1, %s23
  %s26 = scalar_select 0, %s25, %s23
  $region1: #{seq2seq_forward.1} parent=0
    #allocation3 [shape = 'u8[8192]{0}', space=vmem, size = 0x2000, scoped, tag = 'output window, operand 0, single buffered']
    #allocation4 [shape = 's32[1]{0}', space=sflag, size = 0x4, scoped, tag = 'scoped memory for seq2seq_forward.1']
    #allocation5 [shape = 'u8[8192]{0}', space=vmem, size = 0x2000, scoped, tag = 'output window, operand 1, single buffered']
    #allocation6 [shape = 's32[1]{0}', space=sflag, size = 0x4, scoped, tag = 'scoped memory for seq2seq_forward.1']
    %27 = vsyncpa [#allocation4], 0
    %28 = vsyncpa [#allocation6], 0
    // Predicated region
    $region2: #{seq2seq_forward.1} parent=1 // pred_check
      _
    $region3: #{seq2seq_forward.1} parent=1 // pred_check_branch
      %30 = sbr.rel (0) target = $region5
    $region4: #{seq2seq_forward.1} parent=1 // pred_region
      _
    $region5: #{seq2seq_forward.1} parent=1 // pred_fallthru
      _
    // Predicated region
    $region6: #{seq2seq_forward.1} parent=1 // pred_check
      _
    $region7: #{seq2seq_forward.1} parent=1 // pred_check_branch
      %32 = sbr.rel (0) target = $region9
    $region8: #{seq2seq_forward.1} parent=1 // pred_region
      _
    $region9: #{seq2seq_forward.1} parent=1 // pred_fallthru
      _
    // Predicated region
    $region10: #{seq2seq_forward.1} parent=1 // pred_check
      _
    $region11: #{seq2seq_forward.1} parent=1 // pred_check_branch
      %34 = sbr.rel (0) target = $region13
    $region12: #{seq2seq_forward.1} parent=1 // pred_region
      _
    $region13: #{seq2seq_forward.1} parent=1 // pred_fallthru
      _
    // Predicated region
    $region14: #{seq2seq_forward.1} parent=1 // pred_check
      _
    $region15: #{seq2seq_forward.1} parent=1 // pred_check_branch
      %36 = sbr.rel (0) target = $region17
    $region16: #{seq2seq_forward.1} parent=1 // pred_region
      _
    $region17: #{seq2seq_forward.1} parent=1 // pred_fallthru
      _
    // Predicated region
    $region18: #{seq2seq_forward.1} parent=1 // pred_check
      _
    $region19: #{seq2seq_forward.1} parent=1 // pred_check_branch
      %38 = sbr.rel (0) target = $region21
    $region20: #{seq2seq_forward.1} parent=1 // pred_region
      _
    $region21: #{seq2seq_forward.1} parent=1 // pred_fallthru
      _
    // Predicated region
    $region22: #{seq2seq_forward.1} parent=1 // pred_check
      _
    $region23: #{seq2seq_forward.1} parent=1 // pred_check_branch
      %40 = sbr.rel (0) target = $region25
    $region24: #{seq2seq_forward.1} parent=1 // pred_region
      _
    $region25: #{seq2seq_forward.1} parent=1 // pred_fallthru
      _
    // Predicated region
    $region26: #{seq2seq_forward.1} parent=1 // pred_check
      _
    $region27: #{seq2seq_forward.1} parent=1 // pred_check_branch
      %42 = sbr.rel (0) target = $region29
    $region28: #{seq2seq_forward.1} parent=1 // pred_region
      _
    $region29: #{seq2seq_forward.1} parent=1 // pred_fallthru
      _
    // Predicated region
    $region30: #{seq2seq_forward.1} parent=1 // pred_check
      _
    $region31: #{seq2seq_forward.1} parent=1 // pred_check_branch
      %44 = sbr.rel (0) target = $region33
    $region32: #{seq2seq_forward.1} parent=1 // pred_region
      _
    $region33: #{seq2seq_forward.1} parent=1 // pred_fallthru
      _
    // Predicated region
    $region34: #{seq2seq_forward.1} parent=1 // pred_check
      _
    $region35: #{seq2seq_forward.1} parent=1 // pred_check_branch
      %46 = sbr.rel (0) target = $region37
    $region36: #{seq2seq_forward.1} parent=1 // pred_region
      _
    $region37: #{seq2seq_forward.1} parent=1 // pred_fallthru
      _
    // Predicated region
    $region38: #{seq2seq_forward.1} parent=1 // pred_check
      _
    $region39: #{seq2seq_forward.1} parent=1 // pred_check_branch
      %48 = sbr.rel (0) target = $region41
    $region40: #{seq2seq_forward.1} parent=1 // pred_region
      _
    $region41: #{seq2seq_forward.1} parent=1 // pred_fallthru
      _
    // Predicated region
    $region42: #{seq2seq_forward.1} parent=1 // pred_check
      _
    $region43: #{seq2seq_forward.1} parent=1 // pred_check_branch
      %50 = sbr.rel (0) target = $region45
    $region44: #{seq2seq_forward.1} parent=1 // pred_region
      _
    $region45: #{seq2seq_forward.1} parent=1 // pred_fallthru
      _
    // Predicated region
    $region46: #{seq2seq_forward.1} parent=1 // pred_check
      _
    $region47: #{seq2seq_forward.1} parent=1 // pred_check_branch
      %52 = sbr.rel (0) target = $region49
    $region48: #{seq2seq_forward.1} parent=1 // pred_region
      _
    $region49: #{seq2seq_forward.1} parent=1 // pred_fallthru
      _
    // Predicated region
    $region50: #{seq2seq_forward.1} parent=1 // pred_check
      _
    $region51: #{seq2seq_forward.1} parent=1 // pred_check_branch
      %54 = sbr.rel (0) target = $region53
    $region52: #{seq2seq_forward.1} parent=1 // pred_region
      _
    $region53: #{seq2seq_forward.1} parent=1 // pred_fallthru
      _
    // Predicated region
    $region54: #{seq2seq_forward.1} parent=1 // pred_check
      _
    $region55: #{seq2seq_forward.1} parent=1 // pred_check_branch
      %56 = sbr.rel (0) target = $region57
    $region56: #{seq2seq_forward.1} parent=1 // pred_region
      _
    $region57: #{seq2seq_forward.1} parent=1 // pred_fallthru
      _
    // Predicated region
    $region58: #{seq2seq_forward.1} parent=1 // pred_check
      _
    $region59: #{seq2seq_forward.1} parent=1 // pred_check_branch
      %58 = sbr.rel (0) target = $region61
    $region60: #{seq2seq_forward.1} parent=1 // pred_region
      _
    $region61: #{seq2seq_forward.1} parent=1 // pred_fallthru
      _
    // Predicated region
    $region62: #{seq2seq_forward.1} parent=1 // pred_check
      _
    $region63: #{seq2seq_forward.1} parent=1 // pred_check_branch
      %60 = sbr.rel (0) target = $region65
    $region64: #{seq2seq_forward.1} parent=1 // pred_region
      _
    $region65: #{seq2seq_forward.1} parent=1 // pred_fallthru
      _
    // Predicated region
    $region66: #{seq2seq_forward.1} parent=1 // pred_check
      _
    $region67: #{seq2seq_forward.1} parent=1 // pred_check_branch
      %62 = sbr.rel (0) target = $region69
    $region68: #{seq2seq_forward.1} parent=1 // pred_region
      _
    $region69: #{seq2seq_forward.1} parent=1 // pred_fallthru
      _
    // Predicated region
    $region70: #{seq2seq_forward.1} parent=1 // pred_check
      _
    $region71: #{seq2seq_forward.1} parent=1 // pred_check_branch
      %64 = sbr.rel (0) target = $region73
    $region72: #{seq2seq_forward.1} parent=1 // pred_region
      _
    $region73: #{seq2seq_forward.1} parent=1 // pred_fallthru
      _
    // Predicated region
    $region74: #{seq2seq_forward.1} parent=1 // pred_check
      _
    $region75: #{seq2seq_forward.1} parent=1 // pred_check_branch
      %66 = sbr.rel (0) target = $region77
    $region76: #{seq2seq_forward.1} parent=1 // pred_region
      _
    $region77: #{seq2seq_forward.1} parent=1 // pred_fallthru
      _
    // Predicated region
    $region78: #{seq2seq_forward.1} parent=1 // pred_check
      _
    $region79: #{seq2seq_forward.1} parent=1 // pred_check_branch
      %68 = sbr.rel (0) target = $region81
    $region80: #{seq2seq_forward.1} parent=1 // pred_region
      _
    $region81: #{seq2seq_forward.1} parent=1 // pred_fallthru
      _
    %v69 = vld [vmem:[%s0] sm:$0xff]
    %v70 = vld [vmem:[%s0 + $0x8] sm:$0xff]
    %v71 = vld [vmem:[%s2] sm:$0xff]
    %v72 = vld [vmem:[%s2 + $0x8] sm:$0xff]
    %v73 = vld [vmem:[%s2 + $0x10] sm:$0xff]
    %v74 = vld [vmem:[%s2 + $0x18] sm:$0xff]
    %v75 = vld [vmem:[%s3] sm:$0x1]
    %v77 = vlaneseq
    %v78 = vshrl.u32 %v77, 7
    %v79 = vsub.s32 0, %v78
    %v80 = vrot.slane %v75, %v79
    %vm82 = vcmask 261120
    %v84 = vsel %vm82, %v69, 0
    %v87 = vsel %vm82, %v70, 0
    %89 = vmatprep.subr.mxu0 0.0
    %90 = vmatpush1.msra.mxu0 %v71
    %91 = vmatprep.subr.mxu0 0.0
    %92 = vmatpush1.msra.mxu0 %v72
    %93 = vmatprep.subr.mxu0 0.0
    %94 = vmatpush1.msra.mxu0 %v73
    %95 = vmatprep.subr.mxu0 0.0
    %96 = vmatpush1.msra.mxu0 %v74
    %97 = vmatprep.subr.mxu0 0.0
    %98 = vmatpush1.msra.mxu0 0.0
    %99 = vmatprep.subr.mxu0 0.0
    %100 = vmatpush1.msra.mxu0 0.0
    %101 = vmatprep.subr.mxu0 0.0
    %102 = vmatpush1.msra.mxu0 0.0
    %103 = vmatprep.subr.mxu0 0.0
    %104 = vmatpush1.msra.mxu0 0.0
    %105 = vmatprep.subr.mxu0 0.0
    %106 = vmatpush1.msra.mxu0 0.0
    %107 = vmatprep.subr.mxu0 0.0
    %108 = vmatpush1.msra.mxu0 0.0
    %109 = vmatprep.subr.mxu0 0.0
    %110 = vmatpush1.msra.mxu0 0.0
    %111 = vmatprep.subr.mxu0 0.0
    %112 = vmatpush1.msra.mxu0 0.0
    %113 = vmatprep.subr.mxu0 0.0
    %114 = vmatpush1.msra.mxu0 0.0
    %115 = vmatprep.subr.mxu0 0.0
    %116 = vmatpush1.msra.mxu0 0.0
    %117 = vmatprep.subr.mxu0 0.0
    %118 = vmatpush1.msra.mxu0 0.0
    %119 = vmatprep.subr.mxu0 0.0
    %120 = vmatpush1.msra.mxu0 0.0
    %121 = vmatprep.subr.mxu0 0.0
    %122 = vmatpush1.msra.mxu0 0.0
    %123 = vmatprep.subr.mxu0 0.0
    %124 = vmatpush1.msra.mxu0 0.0
    %125 = vmatprep.subr.mxu0 0.0
    %126 = vmatpush1.msra.mxu0 0.0
    %127 = vmatprep.subr.mxu0 0.0
    %128 = vmatpush1.msra.mxu0 0.0
    %129 = vmatprep.subr.mxu0 0.0
    %130 = vmatpush1.msra.mxu0 0.0
    %131 = vmatprep.subr.mxu0 0.0
    %132 = vmatpush1.msra.mxu0 0.0
    %133 = vmatprep.subr.mxu0 0.0
    %134 = vmatpush1.msra.mxu0 0.0
    %135 = vmatprep.subr.mxu0 0.0
    %136 = vmatpush1.msra.mxu0 0.0
    %137 = vmatprep.subr.mxu0 0.0
    %138 = vmatpush1.msra.mxu0 0.0
    %139 = vmatprep.subr.mxu0 0.0
    %140 = vmatpush1.msra.mxu0 0.0
    %141 = vmatprep.subr.mxu0 0.0
    %142 = vmatpush1.msra.mxu0 0.0
    %143 = vmatprep.subr.mxu0 0.0
    %144 = vmatpush1.msra.mxu0 0.0
    %145 = vmatprep.subr.mxu0 0.0
    %146 = vmatpush1.msra.mxu0 0.0
    %147 = vmatprep.subr.mxu0 0.0
    %148 = vmatpush1.msra.mxu0 0.0
    %149 = vmatprep.subr.mxu0 0.0
    %150 = vmatpush1.msra.mxu0 0.0
    %151 = vmatprep.subr.mxu0 0.0
    %152 = vmatpush1.msra.mxu0 0.0
    %153 = vmatprep.mubr.f32.mxu0 0.0
    %154 = vmatmul.mubr.f32.gmra.mrb[0].mxu0 %v84
    %v155 = vpop.f32.mrb[0].mxu0
    %v156 = vadd.f32 %v80, %v155
    %v157 = vpop.f32.mrb[0].mxu0
    %158 = vmatprep.mubr.f32.mxu0 0.0
    %159 = vmatmul.mubr.f32.gmra.mrb[0].mxu0 %v87
    %v160 = vpop.f32.mrb[0].mxu0
    %v161 = vadd.f32 %v80, %v160
    %v162 = vpop.f32.mrb[0].mxu0
    %163 = vdwg.mxu0
    %vm164 = vcmask 785408
    %165 = vst.msk [vmem:[#allocation2] sm:$0xff] %vm164, 0.0
    %166 = vst.msk [vmem:[#allocation2 + $0x8] sm:$0xff] %vm164, 0.0
    %vm167 = vcmask 260096
    %168 = vst.msk [vmem:[#allocation2 + $0x1] sm:$0x7f] %vm167, %v156
    %170 = vrot.lane.b32.xlu0 %v156, 32
    %v171 = vpop.permute.xlu0 %170
    %vm173 = vcmask 523520
    %174 = vst.msk [vmem:[#allocation2] sm:$0xff] %vm173, %v171
    %175 = vrot.lane.b32.xlu0 %v156, 64
    %v176 = vpop.permute.xlu0 %175
    %vm178 = vcmask 785921
    %179 = vst.msk [vmem:[#allocation2 - $0x1] sm:$0xfe] %vm178, %v176
    %180 = vst.msk [vmem:[#allocation2 + $0x9] sm:$0x7f] %vm167, %v161
    %182 = vrot.lane.b32.xlu0 %v161, 32
    %v183 = vpop.permute.xlu0 %182
    %185 = vst.msk [vmem:[#allocation2 + $0x8] sm:$0xff] %vm173, %v183
    %186 = vrot.lane.b32.xlu0 %v161, 64
    %v187 = vpop.permute.xlu0 %186
    %189 = vst.msk [vmem:[#allocation2 + $0x7] sm:$0xfe] %vm178, %v187
    %v190 = vld [vmem:[#allocation2] sm:$0xff]
    %v191 = vld [vmem:[#allocation2 + $0x8] sm:$0xff]
    %v192 = vld [vmem:[%s4] sm:$0xff]
    %v193 = vld [vmem:[%s4 + $0x8] sm:$0xff]
    %v194 = vld [vmem:[%s4 + $0x10] sm:$0xff]
    %v195 = vld [vmem:[%s4 + $0x18] sm:$0xff]
    %v196 = vld [vmem:[%s4 + $0x20] sm:$0xff]
    %v197 = vld [vmem:[%s4 + $0x28] sm:$0xff]
    %v198 = vld [vmem:[%s4 + $0x30] sm:$0xff]
    %v199 = vld [vmem:[%s4 + $0x38] sm:$0xff]
    %v200 = vld [vmem:[%s4 + $0x40] sm:$0xff]
    %v201 = vld [vmem:[%s4 + $0x48] sm:$0xff]
    %v202 = vld [vmem:[%s4 + $0x50] sm:$0xff]
    %v203 = vld [vmem:[%s4 + $0x58] sm:$0xff]
    %v204 = vld [vmem:[%s5] sm:$0x1]
    %v206 = vlaneseq
    %v207 = vshrl.u32 %v206, 7
    %v208 = vsub.s32 0, %v207
    %v209 = vrot.slane %v204, %v208
    %v212 = vsel %vm164, %v190, 0
    %v215 = vsel %vm164, %v191, 0
    %217 = vmatprep.subr.mxu0 0.0
    %218 = vmatpush1.msra.mxu0 %v192
    %219 = vmatprep.subr.mxu0 0.0
    %220 = vmatpush1.msra.mxu0 %v193
    %221 = vmatprep.subr.mxu0 0.0
    %222 = vmatpush1.msra.mxu0 %v194
    %223 = vmatprep.subr.mxu0 0.0
    %224 = vmatpush1.msra.mxu0 %v195
    %225 = vmatprep.subr.mxu0 0.0
    %226 = vmatpush1.msra.mxu0 %v196
    %227 = vmatprep.subr.mxu0 0.0
    %228 = vmatpush1.msra.mxu0 %v197
    %229 = vmatprep.subr.mxu0 0.0
    %230 = vmatpush1.msra.mxu0 %v198
    %231 = vmatprep.subr.mxu0 0.0
    %232 = vmatpush1.msra.mxu0 %v199
    %233 = vmatprep.subr.mxu0 0.0
    %234 = vmatpush1.msra.mxu0 %v200
    %235 = vmatprep.subr.mxu0 0.0
    %236 = vmatpush1.msra.mxu0 %v201
    %237 = vmatprep.subr.mxu0 0.0
    %238 = vmatpush1.msra.mxu0 %v202
    %239 = vmatprep.subr.mxu0 0.0
    %240 = vmatpush1.msra.mxu0 %v203
    %241 = vmatprep.subr.mxu0 0.0
    %242 = vmatpush1.msra.mxu0 0.0
    %243 = vmatprep.subr.mxu0 0.0
    %244 = vmatpush1.msra.mxu0 0.0
    %245 = vmatprep.subr.mxu0 0.0
    %246 = vmatpush1.msra.mxu0 0.0
    %247 = vmatprep.subr.mxu0 0.0
    %248 = vmatpush1.msra.mxu0 0.0
    %249 = vmatprep.subr.mxu0 0.0
    %250 = vmatpush1.msra.mxu0 0.0
    %251 = vmatprep.subr.mxu0 0.0
    %252 = vmatpush1.msra.mxu0 0.0
    %253 = vmatprep.subr.mxu0 0.0
    %254 = vmatpush1.msra.mxu0 0.0
    %255 = vmatprep.subr.mxu0 0.0
    %256 = vmatpush1.msra.mxu0 0.0
    %257 = vmatprep.subr.mxu0 0.0
    %258 = vmatpush1.msra.mxu0 0.0
    %259 = vmatprep.subr.mxu0 0.0
    %260 = vmatpush1.msra.mxu0 0.0
    %261 = vmatprep.subr.mxu0 0.0
    %262 = vmatpush1.msra.mxu0 0.0
    %263 = vmatprep.subr.mxu0 0.0
    %264 = vmatpush1.msra.mxu0 0.0
    %265 = vmatprep.subr.mxu0 0.0
    %266 = vmatpush1.msra.mxu0 0.0
    %267 = vmatprep.subr.mxu0 0.0
    %268 = vmatpush1.msra.mxu0 0.0
    %269 = vmatprep.subr.mxu0 0.0
    %270 = vmatpush1.msra.mxu0 0.0
    %271 = vmatprep.subr.mxu0 0.0
    %272 = vmatpush1.msra.mxu0 0.0
    %273 = vmatprep.subr.mxu0 0.0
    %274 = vmatpush1.msra.mxu0 0.0
    %275 = vmatprep.subr.mxu0 0.0
    %276 = vmatpush1.msra.mxu0 0.0
    %277 = vmatprep.subr.mxu0 0.0
    %278 = vmatpush1.msra.mxu0 0.0
    %279 = vmatprep.subr.mxu0 0.0
    %280 = vmatpush1.msra.mxu0 0.0
    %281 = vmatprep.mubr.f32.mxu0 0.0
    %282 = vmatmul.mubr.f32.gmra.mrb[0].mxu0 %v212
    %v283 = vpop.f32.mrb[0].mxu0
    %v284 = vadd.f32 %v209, %v283
    %v285 = vpop.f32.mrb[0].mxu0
    %286 = vmatprep.mubr.f32.mxu0 0.0
    %287 = vmatmul.mubr.f32.gmra.mrb[0].mxu0 %v215
    %v288 = vpop.f32.mrb[0].mxu0
    %v289 = vadd.f32 %v209, %v288
    %v290 = vpop.f32.mrb[0].mxu0
    %291 = vdwg.mxu0
    %v292 = vxor.u32 %v284, 2147483648
    %v293 = vxor.u32 %v289, 2147483648
    %v294 = vmul.f32 %v292, 1.442695
    %v295 = vpow.pop %v294
    %v296 = vmul.f32 %v293, 1.442695
    %v297 = vpow.pop %v296
    %v298 = vadd.f32 %v295, 1.0
    %v299 = vadd.f32 %v297, 1.0
    %v300 = vrcp.pop %v298
    %v301 = vmul.f32 1.0, %v300
    %v302 = vrcp.pop %v299
    %v303 = vmul.f32 1.0, %v302
    %306 = vrot.lane.b32.xlu0 %v301, 96
    %v307 = vpop.permute.xlu0 %306
    %308 = vrot.lane.b32.xlu0 %v303, 96
    %v309 = vpop.permute.xlu0 %308
    %v312 = vmul.f32 %v284, %v307
    %v313 = vmul.f32 %v289, %v309
    %v314 = vadd.f32 %v312, %v156
    %v315 = vadd.f32 %v313, %v161
    %v316 = vmul.f32 %v314, 0.70710677
    %v317 = vmul.f32 %v315, 0.70710677
    %318 = vst.msk [vmem:[#allocation2] sm:$0xff] %vm164, 0.0
    %319 = vst.msk [vmem:[#allocation2 + $0x8] sm:$0xff] %vm164, 0.0
    %320 = vst.msk [vmem:[#allocation2 + $0x1] sm:$0x7f] %vm167, %v316
    %322 = vrot.lane.b32.xlu0 %v316, 32
    %v323 = vpop.permute.xlu0 %322
    %325 = vst.msk [vmem:[#allocation2] sm:$0xff] %vm173, %v323
    %326 = vrot.lane.b32.xlu0 %v316, 64
    %v327 = vpop.permute.xlu0 %326
    %329 = vst.msk [vmem:[#allocation2 - $0x1] sm:$0xfe] %vm178, %v327
    %330 = vst.msk [vmem:[#allocation2 + $0x9] sm:$0x7f] %vm167, %v317
    %332 = vrot.lane.b32.xlu0 %v317, 32
    %v333 = vpop.permute.xlu0 %332
    %335 = vst.msk [vmem:[#allocation2 + $0x8] sm:$0xff] %vm173, %v333
    %336 = vrot.lane.b32.xlu0 %v317, 64
    %v337 = vpop.permute.xlu0 %336
    %339 = vst.msk [vmem:[#allocation2 + $0x7] sm:$0xfe] %vm178, %v337
    %v340 = vld [vmem:[#allocation2] sm:$0xff]
    %v341 = vld [vmem:[#allocation2 + $0x8] sm:$0xff]
    %s342 = scalar_lea.vmem %s4, 96
    %v343 = vld [vmem:[%s342] sm:$0xff]
    %v344 = vld [vmem:[%s342 + $0x8] sm:$0xff]
    %v345 = vld [vmem:[%s342 + $0x10] sm:$0xff]
    %v346 = vld [vmem:[%s342 + $0x18] sm:$0xff]
    %v347 = vld [vmem:[%s342 + $0x20] sm:$0xff]
    %v348 = vld [vmem:[%s342 + $0x28] sm:$0xff]
    %v349 = vld [vmem:[%s342 + $0x30] sm:$0xff]
    %v350 = vld [vmem:[%s342 + $0x38] sm:$0xff]
    %v351 = vld [vmem:[%s342 + $0x40] sm:$0xff]
    %v352 = vld [vmem:[%s342 + $0x48] sm:$0xff]
    %v353 = vld [vmem:[%s342 + $0x50] sm:$0xff]
    %v354 = vld [vmem:[%s342 + $0x58] sm:$0xff]
    %s355 = scalar_lea.vmem %s5, 1
    %v356 = vld [vmem:[%s355] sm:$0x1]
    %v358 = vlaneseq
    %v359 = vshrl.u32 %v358, 7
    %v360 = vsub.s32 0, %v359
    %v361 = vrot.slane %v356, %v360
    %v364 = vsel %vm164, %v340, 0
    %v367 = vsel %vm164, %v341, 0
    %369 = vmatprep.subr.mxu0 0.0
    %370 = vmatpush1.msra.mxu0 %v343
    %371 = vmatprep.subr.mxu0 0.0
    %372 = vmatpush1.msra.mxu0 %v344
    %373 = vmatprep.subr.mxu0 0.0
    %374 = vmatpush1.msra.mxu0 %v345
    %375 = vmatprep.subr.mxu0 0.0
    %376 = vmatpush1.msra.mxu0 %v346
    %377 = vmatprep.subr.mxu0 0.0
    %378 = vmatpush1.msra.mxu0 %v347
    %379 = vmatprep.subr.mxu0 0.0
    %380 = vmatpush1.msra.mxu0 %v348
    %381 = vmatprep.subr.mxu0 0.0
    %382 = vmatpush1.msra.mxu0 %v349
    %383 = vmatprep.subr.mxu0 0.0
    %384 = vmatpush1.msra.mxu0 %v350
    %385 = vmatprep.subr.mxu0 0.0
    %386 = vmatpush1.msra.mxu0 %v351
    %387 = vmatprep.subr.mxu0 0.0
    %388 = vmatpush1.msra.mxu0 %v352
    %389 = vmatprep.subr.mxu0 0.0
    %390 = vmatpush1.msra.mxu0 %v353
    %391 = vmatprep.subr.mxu0 0.0
    %392 = vmatpush1.msra.mxu0 %v354
    %393 = vmatprep.subr.mxu0 0.0
    %394 = vmatpush1.msra.mxu0 0.0
    %395 = vmatprep.subr.mxu0 0.0
    %396 = vmatpush1.msra.mxu0 0.0
    %397 = vmatprep.subr.mxu0 0.0
    %398 = vmatpush1.msra.mxu0 0.0
    %399 = vmatprep.subr.mxu0 0.0
    %400 = vmatpush1.msra.mxu0 0.0
    %401 = vmatprep.subr.mxu0 0.0
    %402 = vmatpush1.msra.mxu0 0.0
    %403 = vmatprep.subr.mxu0 0.0
    %404 = vmatpush1.msra.mxu0 0.0
    %405 = vmatprep.subr.mxu0 0.0
    %406 = vmatpush1.msra.mxu0 0.0
    %407 = vmatprep.subr.mxu0 0.0
    %408 = vmatpush1.msra.mxu0 0.0
    %409 = vmatprep.subr.mxu0 0.0
    %410 = vmatpush1.msra.mxu0 0.0
    %411 = vmatprep.subr.mxu0 0.0
    %412 = vmatpush1.msra.mxu0 0.0
    %413 = vmatprep.subr.mxu0 0.0
    %414 = vmatpush1.msra.mxu0 0.0
    %415 = vmatprep.subr.mxu0 0.0
    %416 = vmatpush1.msra.mxu0 0.0
    %417 = vmatprep.subr.mxu0 0.0
    %418 = vmatpush1.msra.mxu0 0.0
    %419 = vmatprep.subr.mxu0 0.0
    %420 = vmatpush1.msra.mxu0 0.0
    %421 = vmatprep.subr.mxu0 0.0
    %422 = vmatpush1.msra.mxu0 0.0
    %423 = vmatprep.subr.mxu0 0.0
    %424 = vmatpush1.msra.mxu0 0.0
    %425 = vmatprep.subr.mxu0 0.0
    %426 = vmatpush1.msra.mxu0 0.0
    %427 = vmatprep.subr.mxu0 0.0
    %428 = vmatpush1.msra.mxu0 0.0
    %429 = vmatprep.subr.mxu0 0.0
    %430 = vmatpush1.msra.mxu0 0.0
    %431 = vmatprep.subr.mxu0 0.0
    %432 = vmatpush1.msra.mxu0 0.0
    %433 = vmatprep.mubr.f32.mxu0 0.0
    %434 = vmatmul.mubr.f32.gmra.mrb[0].mxu0 %v364
    %v435 = vpop.f32.mrb[0].mxu0
    %v436 = vadd.f32 %v361, %v435
    %v437 = vpop.f32.mrb[0].mxu0
    %438 = vmatprep.mubr.f32.mxu0 0.0
    %439 = vmatmul.mubr.f32.gmra.mrb[0].mxu0 %v367
    %v440 = vpop.f32.mrb[0].mxu0
    %v441 = vadd.f32 %v361, %v440
    %v442 = vpop.f32.mrb[0].mxu0
    %443 = vdwg.mxu0
    %v444 = vxor.u32 %v436, 2147483648
    %v445 = vxor.u32 %v441, 2147483648
    %v446 = vmul.f32 %v444, 1.442695
    %v447 = vpow.pop %v446
    %v448 = vmul.f32 %v445, 1.442695
    %v449 = vpow.pop %v448
    %v450 = vadd.f32 %v447, 1.0
    %v451 = vadd.f32 %v449, 1.0
    %v452 = vrcp.pop %v450
    %v453 = vmul.f32 1.0, %v452
    %v454 = vrcp.pop %v451
    %v455 = vmul.f32 1.0, %v454
    %458 = vrot.lane.b32.xlu0 %v453, 96
    %v459 = vpop.permute.xlu0 %458
    %460 = vrot.lane.b32.xlu0 %v455, 96
    %v461 = vpop.permute.xlu0 %460
    %v464 = vmul.f32 %v436, %v459
    %v465 = vmul.f32 %v441, %v461
    %v466 = vadd.f32 %v464, %v316
    %v467 = vadd.f32 %v465, %v317
    %v468 = vmul.f32 %v466, 0.70710677
    %v469 = vmul.f32 %v467, 0.70710677
    %v470 = vld [vmem:[%s6] sm:$0xff]
    %v471 = vld [vmem:[%s6 + $0x8] sm:$0xff]
    %v472 = vld [vmem:[%s6 + $0x10] sm:$0xff]
    %v473 = vld [vmem:[%s6 + $0x18] sm:$0xff]
    %v474 = vld [vmem:[%s7] sm:$0x1]
    %v476 = vlaneseq
    %v477 = vshrl.u32 %v476, 7
    %v478 = vsub.s32 0, %v477
    %v479 = vrot.slane %v474, %v478
    %v482 = vsel %vm82, %v468, 0
    %v485 = vsel %vm82, %v469, 0
    %487 = vmatprep.subr.mxu0 0.0
    %488 = vmatpush1.msra.mxu0 %v470
    %489 = vmatprep.subr.mxu0 0.0
    %490 = vmatpush1.msra.mxu0 %v471
    %491 = vmatprep.subr.mxu0 0.0
    %492 = vmatpush1.msra.mxu0 %v472
    %493 = vmatprep.subr.mxu0 0.0
    %494 = vmatpush1.msra.mxu0 %v473
    %495 = vmatprep.subr.mxu0 0.0
    %496 = vmatpush1.msra.mxu0 0.0
    %497 = vmatprep.subr.mxu0 0.0
    %498 = vmatpush1.msra.mxu0 0.0
    %499 = vmatprep.subr.mxu0 0.0
    %500 = vmatpush1.msra.mxu0 0.0
    %501 = vmatprep.subr.mxu0 0.0
    %502 = vmatpush1.msra.mxu0 0.0
    %503 = vmatprep.subr.mxu0 0.0
    %504 = vmatpush1.msra.mxu0 0.0
    %505 = vmatprep.subr.mxu0 0.0
    %506 = vmatpush1.msra.mxu0 0.0
    %507 = vmatprep.subr.mxu0 0.0
    %508 = vmatpush1.msra.mxu0 0.0
    %509 = vmatprep.subr.mxu0 0.0
    %510 = vmatpush1.msra.mxu0 0.0
    %511 = vmatprep.subr.mxu0 0.0
    %512 = vmatpush1.msra.mxu0 0.0
    %513 = vmatprep.subr.mxu0 0.0
    %514 = vmatpush1.msra.mxu0 0.0
    %515 = vmatprep.subr.mxu0 0.0
    %516 = vmatpush1.msra.mxu0 0.0
    %517 = vmatprep.subr.mxu0 0.0
    %518 = vmatpush1.msra.mxu0 0.0
    %519 = vmatprep.subr.mxu0 0.0
    %520 = vmatpush1.msra.mxu0 0.0
    %521 = vmatprep.subr.mxu0 0.0
    %522 = vmatpush1.msra.mxu0 0.0
    %523 = vmatprep.subr.mxu0 0.0
    %524 = vmatpush1.msra.mxu0 0.0
    %525 = vmatprep.subr.mxu0 0.0
    %526 = vmatpush1.msra.mxu0 0.0
    %527 = vmatprep.subr.mxu0 0.0
    %528 = vmatpush1.msra.mxu0 0.0
    %529 = vmatprep.subr.mxu0 0.0
    %530 = vmatpush1.msra.mxu0 0.0
    %531 = vmatprep.subr.mxu0 0.0
    %532 = vmatpush1.msra.mxu0 0.0
    %533 = vmatprep.subr.mxu0 0.0
    %534 = vmatpush1.msra.mxu0 0.0
    %535 = vmatprep.subr.mxu0 0.0
    %536 = vmatpush1.msra.mxu0 0.0
    %537 = vmatprep.subr.mxu0 0.0
    %538 = vmatpush1.msra.mxu0 0.0
    %539 = vmatprep.subr.mxu0 0.0
    %540 = vmatpush1.msra.mxu0 0.0
    %541 = vmatprep.subr.mxu0 0.0
    %542 = vmatpush1.msra.mxu0 0.0
    %543 = vmatprep.subr.mxu0 0.0
    %544 = vmatpush1.msra.mxu0 0.0
    %545 = vmatprep.subr.mxu0 0.0
    %546 = vmatpush1.msra.mxu0 0.0
    %547 = vmatprep.subr.mxu0 0.0
    %548 = vmatpush1.msra.mxu0 0.0
    %549 = vmatprep.subr.mxu0 0.0
    %550 = vmatpush1.msra.mxu0 0.0
    %551 = vmatprep.mubr.f32.mxu0 0.0
    %552 = vmatmul.mubr.f32.gmra.mrb[0].mxu0 %v482
    %v553 = vpop.f32.mrb[0].mxu0
    %v554 = vadd.f32 %v479, %v553
    %v555 = vpop.f32.mrb[0].mxu0
    %556 = vmatprep.mubr.f32.mxu0 0.0
    %557 = vmatmul.mubr.f32.gmra.mrb[0].mxu0 %v485
    %v558 = vpop.f32.mrb[0].mxu0
    %v559 = vadd.f32 %v479, %v558
    %v560 = vpop.f32.mrb[0].mxu0
    %561 = vdwg.mxu0
    %v562 = vadd.f32 %v554, %v69
    %v563 = vadd.f32 %v559, %v70
    %v564 = vmul.f32 %v562, 0.70710677
    %v565 = vmul.f32 %v563, 0.70710677
    %v566 = vld [vmem:[%s1] sm:$0xff]
    %v567 = vld [vmem:[%s1 + $0x8] sm:$0xff]
    %v568 = vld [vmem:[%s8] sm:$0xff]
    %v569 = vld [vmem:[%s8 + $0x8] sm:$0xff]
    %v570 = vld [vmem:[%s8 + $0x10] sm:$0xff]
    %v571 = vld [vmem:[%s8 + $0x18] sm:$0xff]
    %v572 = vld [vmem:[%s9] sm:$0x1]
    %v574 = vlaneseq
    %v575 = vshrl.u32 %v574, 7
    %v576 = vsub.s32 0, %v575
    %v577 = vrot.slane %v572, %v576
    %v580 = vsel %vm82, %v566, 0
    %v583 = vsel %vm82, %v567, 0
    %585 = vmatprep.subr.mxu0 0.0
    %586 = vmatpush1.msra.mxu0 %v568
    %587 = vmatprep.subr.mxu0 0.0
    %588 = vmatpush1.msra.mxu0 %v569
    %589 = vmatprep.subr.mxu0 0.0
    %590 = vmatpush1.msra.mxu0 %v570
    %591 = vmatprep.subr.mxu0 0.0
    %592 = vmatpush1.msra.mxu0 %v571
    %593 = vmatprep.subr.mxu0 0.0
    %594 = vmatpush1.msra.mxu0 0.0
    %595 = vmatprep.subr.mxu0 0.0
    %596 = vmatpush1.msra.mxu0 0.0
    %597 = vmatprep.subr.mxu0 0.0
    %598 = vmatpush1.msra.mxu0 0.0
    %599 = vmatprep.subr.mxu0 0.0
    %600 = vmatpush1.msra.mxu0 0.0
    %601 = vmatprep.subr.mxu0 0.0
    %602 = vmatpush1.msra.mxu0 0.0
    %603 = vmatprep.subr.mxu0 0.0
    %604 = vmatpush1.msra.mxu0 0.0
    %605 = vmatprep.subr.mxu0 0.0
    %606 = vmatpush1.msra.mxu0 0.0
    %607 = vmatprep.subr.mxu0 0.0
    %608 = vmatpush1.msra.mxu0 0.0
    %609 = vmatprep.subr.mxu0 0.0
    %610 = vmatpush1.msra.mxu0 0.0
    %611 = vmatprep.subr.mxu0 0.0
    %612 = vmatpush1.msra.mxu0 0.0
    %613 = vmatprep.subr.mxu0 0.0
    %614 = vmatpush1.msra.mxu0 0.0
    %615 = vmatprep.subr.mxu0 0.0
    %616 = vmatpush1.msra.mxu0 0.0
    %617 = vmatprep.subr.mxu0 0.0
    %618 = vmatpush1.msra.mxu0 0.0
    %619 = vmatprep.subr.mxu0 0.0
    %620 = vmatpush1.msra.mxu0 0.0
    %621 = vmatprep.subr.mxu0 0.0
    %622 = vmatpush1.msra.mxu0 0.0
    %623 = vmatprep.subr.mxu0 0.0
    %624 = vmatpush1.msra.mxu0 0.0
    %625 = vmatprep.subr.mxu0 0.0
    %626 = vmatpush1.msra.mxu0 0.0
    %627 = vmatprep.subr.mxu0 0.0
    %628 = vmatpush1.msra.mxu0 0.0
    %629 = vmatprep.subr.mxu0 0.0
    %630 = vmatpush1.msra.mxu0 0.0
    %631 = vmatprep.subr.mxu0 0.0
    %632 = vmatpush1.msra.mxu0 0.0
    %633 = vmatprep.subr.mxu0 0.0
    %634 = vmatpush1.msra.mxu0 0.0
    %635 = vmatprep.subr.mxu0 0.0
    %636 = vmatpush1.msra.mxu0 0.0
    %637 = vmatprep.subr.mxu0 0.0
    %638 = vmatpush1.msra.mxu0 0.0
    %639 = vmatprep.subr.mxu0 0.0
    %640 = vmatpush1.msra.mxu0 0.0
    %641 = vmatprep.subr.mxu0 0.0
    %642 = vmatpush1.msra.mxu0 0.0
    %643 = vmatprep.subr.mxu0 0.0
    %644 = vmatpush1.msra.mxu0 0.0
    %645 = vmatprep.subr.mxu0 0.0
    %646 = vmatpush1.msra.mxu0 0.0
    %647 = vmatprep.subr.mxu0 0.0
    %648 = vmatpush1.msra.mxu0 0.0
    %649 = vmatprep.mubr.f32.mxu0 0.0
    %650 = vmatmul.mubr.f32.gmra.mrb[0].mxu0 %v580
    %v651 = vpop.f32.mrb[0].mxu0
    %v652 = vadd.f32 %v577, %v651
    %v653 = vpop.f32.mrb[0].mxu0
    %654 = vmatprep.mubr.f32.mxu0 0.0
    %655 = vmatmul.mubr.f32.gmra.mrb[0].mxu0 %v583
    %v656 = vpop.f32.mrb[0].mxu0
    %v657 = vadd.f32 %v577, %v656
    %v658 = vpop.f32.mrb[0].mxu0
    %659 = vdwg.mxu0
    %660 = vst.msk [vmem:[#allocation2] sm:$0xff] %vm164, 0.0
    %661 = vst.msk [vmem:[#allocation2 + $0x8] sm:$0xff] %vm164, 0.0
    %vm662 = vcmask 259072
    %663 = vst.msk [vmem:[#allocation2 + $0x2] sm:$0x3f] %vm662, %v652
    %665 = vrot.lane.b32.xlu0 %v652, 32
    %v666 = vpop.permute.xlu0 %665
    %vm668 = vcmask 522496
    %669 = vst.msk [vmem:[#allocation2 + $0x1] sm:$0x7f] %vm668, %v666
    %670 = vrot.lane.b32.xlu0 %v652, 64
    %v671 = vpop.permute.xlu0 %670
    %vm673 = vcmask 785920
    %674 = vst.msk [vmem:[#allocation2] sm:$0xff] %vm673, %v671
    %675 = vst.msk [vmem:[#allocation2 + $0xa] sm:$0x3f] %vm662, %v657
    %677 = vrot.lane.b32.xlu0 %v657, 32
    %v678 = vpop.permute.xlu0 %677
    %680 = vst.msk [vmem:[#allocation2 + $0x9] sm:$0x7f] %vm668, %v678
    %681 = vrot.lane.b32.xlu0 %v657, 64
    %v682 = vpop.permute.xlu0 %681
    %684 = vst.msk [vmem:[#allocation2 + $0x8] sm:$0xff] %vm673, %v682
    %v685 = vld [vmem:[#allocation2] sm:$0xff]
    %v686 = vld [vmem:[#allocation2 + $0x8] sm:$0xff]
    %v687 = vld [vmem:[%s10] sm:$0xff]
    %v688 = vld [vmem:[%s10 + $0x8] sm:$0xff]
    %v689 = vld [vmem:[%s10 + $0x10] sm:$0xff]
    %v690 = vld [vmem:[%s10 + $0x18] sm:$0xff]
    %v691 = vld [vmem:[%s10 + $0x20] sm:$0xff]
    %v692 = vld [vmem:[%s10 + $0x28] sm:$0xff]
    %v693 = vld [vmem:[%s10 + $0x30] sm:$0xff]
    %v694 = vld [vmem:[%s10 + $0x38] sm:$0xff]
    %v695 = vld [vmem:[%s10 + $0x40] sm:$0xff]
    %v696 = vld [vmem:[%s10 + $0x48] sm:$0xff]
    %v697 = vld [vmem:[%s10 + $0x50] sm:$0xff]
    %v698 = vld [vmem:[%s10 + $0x58] sm:$0xff]
    %v699 = vld [vmem:[%s11] sm:$0x1]
    %v701 = vlaneseq
    %v702 = vshrl.u32 %v701, 7
    %v703 = vsub.s32 0, %v702
    %v704 = vrot.slane %v699, %v703
    %v707 = vsel %vm164, %v685, 0
    %v710 = vsel %vm164, %v686, 0
    %712 = vmatprep.subr.mxu0 0.0
    %713 = vmatpush1.msra.mxu0 %v687
    %714 = vmatprep.subr.mxu0 0.0
    %715 = vmatpush1.msra.mxu0 %v688
    %716 = vmatprep.subr.mxu0 0.0
    %717 = vmatpush1.msra.mxu0 %v689
    %718 = vmatprep.subr.mxu0 0.0
    %719 = vmatpush1.msra.mxu0 %v690
    %720 = vmatprep.subr.mxu0 0.0
    %721 = vmatpush1.msra.mxu0 %v691
    %722 = vmatprep.subr.mxu0 0.0
    %723 = vmatpush1.msra.mxu0 %v692
    %724 = vmatprep.subr.mxu0 0.0
    %725 = vmatpush1.msra.mxu0 %v693
    %726 = vmatprep.subr.mxu0 0.0
    %727 = vmatpush1.msra.mxu0 %v694
    %728 = vmatprep.subr.mxu0 0.0
    %729 = vmatpush1.msra.mxu0 %v695
    %730 = vmatprep.subr.mxu0 0.0
    %731 = vmatpush1.msra.mxu0 %v696
    %732 = vmatprep.subr.mxu0 0.0
    %733 = vmatpush1.msra.mxu0 %v697
    %734 = vmatprep.subr.mxu0 0.0
    %735 = vmatpush1.msra.mxu0 %v698
    %736 = vmatprep.subr.mxu0 0.0
    %737 = vmatpush1.msra.mxu0 0.0
    %738 = vmatprep.subr.mxu0 0.0
    %739 = vmatpush1.msra.mxu0 0.0
    %740 = vmatprep.subr.mxu0 0.0
    %741 = vmatpush1.msra.mxu0 0.0
    %742 = vmatprep.subr.mxu0 0.0
    %743 = vmatpush1.msra.mxu0 0.0
    %744 = vmatprep.subr.mxu0 0.0
    %745 = vmatpush1.msra.mxu0 0.0
    %746 = vmatprep.subr.mxu0 0.0
    %747 = vmatpush1.msra.mxu0 0.0
    %748 = vmatprep.subr.mxu0 0.0
    %749 = vmatpush1.msra.mxu0 0.0
    %750 = vmatprep.subr.mxu0 0.0
    %751 = vmatpush1.msra.mxu0 0.0
    %752 = vmatprep.subr.mxu0 0.0
    %753 = vmatpush1.msra.mxu0 0.0
    %754 = vmatprep.subr.mxu0 0.0
    %755 = vmatpush1.msra.mxu0 0.0
    %756 = vmatprep.subr.mxu0 0.0
    %757 = vmatpush1.msra.mxu0 0.0
    %758 = vmatprep.subr.mxu0 0.0
    %759 = vmatpush1.msra.mxu0 0.0
    %760 = vmatprep.subr.mxu0 0.0
    %761 = vmatpush1.msra.mxu0 0.0
    %762 = vmatprep.subr.mxu0 0.0
    %763 = vmatpush1.msra.mxu0 0.0
    %764 = vmatprep.subr.mxu0 0.0
    %765 = vmatpush1.msra.mxu0 0.0
    %766 = vmatprep.subr.mxu0 0.0
    %767 = vmatpush1.msra.mxu0 0.0
    %768 = vmatprep.subr.mxu0 0.0
    %769 = vmatpush1.msra.mxu0 0.0
    %770 = vmatprep.subr.mxu0 0.0
    %771 = vmatpush1.msra.mxu0 0.0
    %772 = vmatprep.subr.mxu0 0.0
    %773 = vmatpush1.msra.mxu0 0.0
    %774 = vmatprep.subr.mxu0 0.0
    %775 = vmatpush1.msra.mxu0 0.0
    %776 = vmatprep.mubr.f32.mxu0 0.0
    %777 = vmatmul.mubr.f32.gmra.mrb[0].mxu0 %v707
    %v778 = vpop.f32.mrb[0].mxu0
    %v779 = vadd.f32 %v704, %v778
    %v780 = vpop.f32.mrb[0].mxu0
    %781 = vmatprep.mubr.f32.mxu0 0.0
    %782 = vmatmul.mubr.f32.gmra.mrb[0].mxu0 %v710
    %v783 = vpop.f32.mrb[0].mxu0
    %v784 = vadd.f32 %v704, %v783
    %v785 = vpop.f32.mrb[0].mxu0
    %786 = vdwg.mxu0
    %v787 = vxor.u32 %v779, 2147483648
    %v788 = vxor.u32 %v784, 2147483648
    %v789 = vmul.f32 %v787, 1.442695
    %v790 = vpow.pop %v789
    %v791 = vmul.f32 %v788, 1.442695
    %v792 = vpow.pop %v791
    %v793 = vadd.f32 %v790, 1.0
    %v794 = vadd.f32 %v792, 1.0
    %v795 = vrcp.pop %v793
    %v796 = vmul.f32 1.0, %v795
    %v797 = vrcp.pop %v794
    %v798 = vmul.f32 1.0, %v797
    %801 = vrot.lane.b32.xlu0 %v796, 96
    %v802 = vpop.permute.xlu0 %801
    %803 = vrot.lane.b32.xlu0 %v798, 96
    %v804 = vpop.permute.xlu0 %803
    %v807 = vmul.f32 %v779, %v802
    %v808 = vmul.f32 %v784, %v804
    %v809 = vld [vmem:[%s12] sm:$0xff]
    %v810 = vld [vmem:[%s12 + $0x8] sm:$0xff]
    %v811 = vld [vmem:[%s12 + $0x10] sm:$0xff]
    %v812 = vld [vmem:[%s12 + $0x18] sm:$0xff]
    %v813 = vld [vmem:[%s13] sm:$0x1]
    %v815 = vlaneseq
    %v816 = vshrl.u32 %v815, 7
    %v817 = vsub.s32 0, %v816
    %v818 = vrot.slane %v813, %v817
    %v821 = vsel %vm82, %v807, 0
    %v824 = vsel %vm82, %v808, 0
    %826 = vmatprep.subr.mxu0 0.0
    %827 = vmatpush1.msra.mxu0 %v809
    %828 = vmatprep.subr.mxu0 0.0
    %829 = vmatpush1.msra.mxu0 %v810
    %830 = vmatprep.subr.mxu0 0.0
    %831 = vmatpush1.msra.mxu0 %v811
    %832 = vmatprep.subr.mxu0 0.0
    %833 = vmatpush1.msra.mxu0 %v812
    %834 = vmatprep.subr.mxu0 0.0
    %835 = vmatpush1.msra.mxu0 0.0
    %836 = vmatprep.subr.mxu0 0.0
    %837 = vmatpush1.msra.mxu0 0.0
    %838 = vmatprep.subr.mxu0 0.0
    %839 = vmatpush1.msra.mxu0 0.0
    %840 = vmatprep.subr.mxu0 0.0
    %841 = vmatpush1.msra.mxu0 0.0
    %842 = vmatprep.subr.mxu0 0.0
    %843 = vmatpush1.msra.mxu0 0.0
    %844 = vmatprep.subr.mxu0 0.0
    %845 = vmatpush1.msra.mxu0 0.0
    %846 = vmatprep.subr.mxu0 0.0
    %847 = vmatpush1.msra.mxu0 0.0
    %848 = vmatprep.subr.mxu0 0.0
    %849 = vmatpush1.msra.mxu0 0.0
    %850 = vmatprep.subr.mxu0 0.0
    %851 = vmatpush1.msra.mxu0 0.0
    %852 = vmatprep.subr.mxu0 0.0
    %853 = vmatpush1.msra.mxu0 0.0
    %854 = vmatprep.subr.mxu0 0.0
    %855 = vmatpush1.msra.mxu0 0.0
    %856 = vmatprep.subr.mxu0 0.0
    %857 = vmatpush1.msra.mxu0 0.0
    %858 = vmatprep.subr.mxu0 0.0
    %859 = vmatpush1.msra.mxu0 0.0
    %860 = vmatprep.subr.mxu0 0.0
    %861 = vmatpush1.msra.mxu0 0.0
    %862 = vmatprep.subr.mxu0 0.0
    %863 = vmatpush1.msra.mxu0 0.0
    %864 = vmatprep.subr.mxu0 0.0
    %865 = vmatpush1.msra.mxu0 0.0
    %866 = vmatprep.subr.mxu0 0.0
    %867 = vmatpush1.msra.mxu0 0.0
    %868 = vmatprep.subr.mxu0 0.0
    %869 = vmatpush1.msra.mxu0 0.0
    %870 = vmatprep.subr.mxu0 0.0
    %871 = vmatpush1.msra.mxu0 0.0
    %872 = vmatprep.subr.mxu0 0.0
    %873 = vmatpush1.msra.mxu0 0.0
    %874 = vmatprep.subr.mxu0 0.0
    %875 = vmatpush1.msra.mxu0 0.0
    %876 = vmatprep.subr.mxu0 0.0
    %877 = vmatpush1.msra.mxu0 0.0
    %878 = vmatprep.subr.mxu0 0.0
    %879 = vmatpush1.msra.mxu0 0.0
    %880 = vmatprep.subr.mxu0 0.0
    %881 = vmatpush1.msra.mxu0 0.0
    %882 = vmatprep.subr.mxu0 0.0
    %883 = vmatpush1.msra.mxu0 0.0
    %884 = vmatprep.subr.mxu0 0.0
    %885 = vmatpush1.msra.mxu0 0.0
    %886 = vmatprep.subr.mxu0 0.0
    %887 = vmatpush1.msra.mxu0 0.0
    %888 = vmatprep.subr.mxu0 0.0
    %889 = vmatpush1.msra.mxu0 0.0
    %890 = vmatprep.mubr.f32.mxu0 0.0
    %891 = vmatmul.mubr.f32.gmra.mrb[0].mxu0 %v821
    %v892 = vpop.f32.mrb[0].mxu0
    %v893 = vadd.f32 %v818, %v892
    %v894 = vpop.f32.mrb[0].mxu0
    %895 = vmatprep.mubr.f32.mxu0 0.0
    %896 = vmatmul.mubr.f32.gmra.mrb[0].mxu0 %v824
    %v897 = vpop.f32.mrb[0].mxu0
    %v898 = vadd.f32 %v818, %v897
    %v899 = vpop.f32.mrb[0].mxu0
    %900 = vdwg.mxu0
    %v901 = vadd.f32 %v893, %v566
    %v902 = vadd.f32 %v898, %v567
    %v903 = vmul.f32 %v901, 0.70710677
    %v904 = vmul.f32 %v902, 0.70710677
    %v906 = vsel %vm82, %v903, 0
    %v909 = vsel %vm82, %v554, 0
    %911 = vmatprep.subr.mxu0 0.0
    %912 = vmatpush1.xpose.msra.mxu0 %v909
    %913 = vmatprep.subr.mxu0 0.0
    %914 = vmatpush1.xpose.msra.mxu0 0.0
    %915 = vmatprep.subr.mxu0 0.0
    %916 = vmatpush1.xpose.msra.mxu0 0.0
    %917 = vmatprep.subr.mxu0 0.0
    %918 = vmatpush1.xpose.msra.mxu0 0.0
    %919 = vmatprep.subr.mxu0 0.0
    %920 = vmatpush1.xpose.msra.mxu0 0.0
    %921 = vmatprep.subr.mxu0 0.0
    %922 = vmatpush1.xpose.msra.mxu0 0.0
    %923 = vmatprep.subr.mxu0 0.0
    %924 = vmatpush1.xpose.msra.mxu0 0.0
    %925 = vmatprep.subr.mxu0 0.0
    %926 = vmatpush1.xpose.msra.mxu0 0.0
    %927 = vmatprep.subr.mxu0 0.0
    %928 = vmatpush1.xpose.msra.mxu0 0.0
    %929 = vmatprep.subr.mxu0 0.0
    %930 = vmatpush1.xpose.msra.mxu0 0.0
    %931 = vmatprep.subr.mxu0 0.0
    %932 = vmatpush1.xpose.msra.mxu0 0.0
    %933 = vmatprep.subr.mxu0 0.0
    %934 = vmatpush1.xpose.msra.mxu0 0.0
    %935 = vmatprep.subr.mxu0 0.0
    %936 = vmatpush1.xpose.msra.mxu0 0.0
    %937 = vmatprep.subr.mxu0 0.0
    %938 = vmatpush1.xpose.msra.mxu0 0.0
    %939 = vmatprep.subr.mxu0 0.0
    %940 = vmatpush1.xpose.msra.mxu0 0.0
    %941 = vmatprep.subr.mxu0 0.0
    %942 = vmatpush1.xpose.msra.mxu0 0.0
    %943 = vmatprep.subr.mxu0 0.0
    %944 = vmatpush1.xpose.msra.mxu0 0.0
    %945 = vmatprep.subr.mxu0 0.0
    %946 = vmatpush1.xpose.msra.mxu0 0.0
    %947 = vmatprep.subr.mxu0 0.0
    %948 = vmatpush1.xpose.msra.mxu0 0.0
    %949 = vmatprep.subr.mxu0 0.0
    %950 = vmatpush1.xpose.msra.mxu0 0.0
    %951 = vmatprep.subr.mxu0 0.0
    %952 = vmatpush1.xpose.msra.mxu0 0.0
    %953 = vmatprep.subr.mxu0 0.0
    %954 = vmatpush1.xpose.msra.mxu0 0.0
    %955 = vmatprep.subr.mxu0 0.0
    %956 = vmatpush1.xpose.msra.mxu0 0.0
    %957 = vmatprep.subr.mxu0 0.0
    %958 = vmatpush1.xpose.msra.mxu0 0.0
    %959 = vmatprep.subr.mxu0 0.0
    %960 = vmatpush1.xpose.msra.mxu0 0.0
    %961 = vmatprep.subr.mxu0 0.0
    %962 = vmatpush1.xpose.msra.mxu0 0.0
    %963 = vmatprep.subr.mxu0 0.0
    %964 = vmatpush1.xpose.msra.mxu0 0.0
    %965 = vmatprep.subr.mxu0 0.0
    %966 = vmatpush1.xpose.msra.mxu0 0.0
    %967 = vmatprep.subr.mxu0 0.0
    %968 = vmatpush1.xpose.msra.mxu0 0.0
    %969 = vmatprep.subr.mxu0 0.0
    %970 = vmatpush1.xpose.msra.mxu0 0.0
    %971 = vmatprep.subr.mxu0 0.0
    %972 = vmatpush1.xpose.msra.mxu0 0.0
    %973 = vmatprep.subr.mxu0 0.0
    %974 = vmatpush1.xpose.msra.mxu0 0.0
    %975 = vmatprep.mubr.f32.mxu0 0.0
    %976 = vmatmul.mubr.f32.gmra.mrb[0].mxu0 %v906
    %v977 = vpop.f32.mrb[0].mxu0
    %v978 = vadd.f32 0.0, %v977
    %v979 = vpop.f32.mrb[0].mxu0
    %980 = vdwg.mxu0
    %vm981 = vcmask 64512
    %v982 = vsel %vm981, %v978, -inf
    %983 = vmax.xlane.f32.xlu0 %v982
    %v984 = vpop.xlane.xlu0 %983
    %v985 = vsub.f32 %v978, %v984
    %v986 = vmul.f32 %v985, 1.442695
    %v987 = vpow.pop %v986
    %v988 = vsel %vm981, %v987, 0.0
    %989 = vadd.xlane.f32.xlu0 %v988
    %v990 = vpop.xlane.xlu0 %989
    %v991 = vrcp.pop %v990
    %v992 = vmul.f32 %v987, %v991
    %v994 = vsel %vm981, %v992, 0
    %996 = vmatprep.subr.mxu0 0.0
    %997 = vmatpush1.msra.mxu0 %v564
    %998 = vmatprep.subr.mxu0 0.0
    %999 = vmatpush1.msra.mxu0 0.0
    %1000 = vmatprep.subr.mxu0 0.0
    %1001 = vmatpush1.msra.mxu0 0.0
    %1002 = vmatprep.subr.mxu0 0.0
    %1003 = vmatpush1.msra.mxu0 0.0
    %1004 = vmatprep.subr.mxu0 0.0
    %1005 = vmatpush1.msra.mxu0 0.0
    %1006 = vmatprep.subr.mxu0 0.0
    %1007 = vmatpush1.msra.mxu0 0.0
    %1008 = vmatprep.subr.mxu0 0.0
    %1009 = vmatpush1.msra.mxu0 0.0
    %1010 = vmatprep.subr.mxu0 0.0
    %1011 = vmatpush1.msra.mxu0 0.0
    %1012 = vmatprep.subr.mxu0 0.0
    %1013 = vmatpush1.msra.mxu0 0.0
    %1014 = vmatprep.subr.mxu0 0.0
    %1015 = vmatpush1.msra.mxu0 0.0
    %1016 = vmatprep.subr.mxu0 0.0
    %1017 = vmatpush1.msra.mxu0 0.0
    %1018 = vmatprep.subr.mxu0 0.0
    %1019 = vmatpush1.msra.mxu0 0.0
    %1020 = vmatprep.subr.mxu0 0.0
    %1021 = vmatpush1.msra.mxu0 0.0
    %1022 = vmatprep.subr.mxu0 0.0
    %1023 = vmatpush1.msra.mxu0 0.0
    %1024 = vmatprep.subr.mxu0 0.0
    %1025 = vmatpush1.msra.mxu0 0.0
    %1026 = vmatprep.subr.mxu0 0.0
    %1027 = vmatpush1.msra.mxu0 0.0
    %1028 = vmatprep.subr.mxu0 0.0
    %1029 = vmatpush1.msra.mxu0 0.0
    %1030 = vmatprep.subr.mxu0 0.0
    %1031 = vmatpush1.msra.mxu0 0.0
    %1032 = vmatprep.subr.mxu0 0.0
    %1033 = vmatpush1.msra.mxu0 0.0
    %1034 = vmatprep.subr.mxu0 0.0
    %1035 = vmatpush1.msra.mxu0 0.0
    %1036 = vmatprep.subr.mxu0 0.0
    %1037 = vmatpush1.msra.mxu0 0.0
    %1038 = vmatprep.subr.mxu0 0.0
    %1039 = vmatpush1.msra.mxu0 0.0
    %1040 = vmatprep.subr.mxu0 0.0
    %1041 = vmatpush1.msra.mxu0 0.0
    %1042 = vmatprep.subr.mxu0 0.0
    %1043 = vmatpush1.msra.mxu0 0.0
    %1044 = vmatprep.subr.mxu0 0.0
    %1045 = vmatpush1.msra.mxu0 0.0
    %1046 = vmatprep.subr.mxu0 0.0
    %1047 = vmatpush1.msra.mxu0 0.0
    %1048 = vmatprep.subr.mxu0 0.0
    %1049 = vmatpush1.msra.mxu0 0.0
    %1050 = vmatprep.subr.mxu0 0.0
    %1051 = vmatpush1.msra.mxu0 0.0
    %1052 = vmatprep.subr.mxu0 0.0
    %1053 = vmatpush1.msra.mxu0 0.0
    %1054 = vmatprep.subr.mxu0 0.0
    %1055 = vmatpush1.msra.mxu0 0.0
    %1056 = vmatprep.subr.mxu0 0.0
    %1057 = vmatpush1.msra.mxu0 0.0
    %1058 = vmatprep.subr.mxu0 0.0
    %1059 = vmatpush1.msra.mxu0 0.0
    %1060 = vmatprep.mubr.f32.mxu0 0.0
    %1061 = vmatmul.mubr.f32.gmra.mrb[0].mxu0 %v994
    %v1062 = vpop.f32.mrb[0].mxu0
    %v1063 = vadd.f32 0.0, %v1062
    %v1064 = vpop.f32.mrb[0].mxu0
    %1065 = vdwg.mxu0
    %v1067 = vsel %vm82, %v904, 0
    %v1070 = vsel %vm82, %v559, 0
    %1072 = vmatprep.subr.mxu0 0.0
    %1073 = vmatpush1.xpose.msra.mxu0 %v1070
    %1074 = vmatprep.subr.mxu0 0.0
    %1075 = vmatpush1.xpose.msra.mxu0 0.0
    %1076 = vmatprep.subr.mxu0 0.0
    %1077 = vmatpush1.xpose.msra.mxu0 0.0
    %1078 = vmatprep.subr.mxu0 0.0
    %1079 = vmatpush1.xpose.msra.mxu0 0.0
    %1080 = vmatprep.subr.mxu0 0.0
    %1081 = vmatpush1.xpose.msra.mxu0 0.0
    %1082 = vmatprep.subr.mxu0 0.0
    %1083 = vmatpush1.xpose.msra.mxu0 0.0
    %1084 = vmatprep.subr.mxu0 0.0
    %1085 = vmatpush1.xpose.msra.mxu0 0.0
    %1086 = vmatprep.subr.mxu0 0.0
    %1087 = vmatpush1.xpose.msra.mxu0 0.0
    %1088 = vmatprep.subr.mxu0 0.0
    %1089 = vmatpush1.xpose.msra.mxu0 0.0
    %1090 = vmatprep.subr.mxu0 0.0
    %1091 = vmatpush1.xpose.msra.mxu0 0.0
    %1092 = vmatprep.subr.mxu0 0.0
    %1093 = vmatpush1.xpose.msra.mxu0 0.0
    %1094 = vmatprep.subr.mxu0 0.0
    %1095 = vmatpush1.xpose.msra.mxu0 0.0
    %1096 = vmatprep.subr.mxu0 0.0
    %1097 = vmatpush1.xpose.msra.mxu0 0.0
    %1098 = vmatprep.subr.mxu0 0.0
    %1099 = vmatpush1.xpose.msra.mxu0 0.0
    %1100 = vmatprep.subr.mxu0 0.0
    %1101 = vmatpush1.xpose.msra.mxu0 0.0
    %1102 = vmatprep.subr.mxu0 0.0
    %1103 = vmatpush1.xpose.msra.mxu0 0.0
    %1104 = vmatprep.subr.mxu0 0.0
    %1105 = vmatpush1.xpose.msra.mxu0 0.0
    %1106 = vmatprep.subr.mxu0 0.0
    %1107 = vmatpush1.xpose.msra.mxu0 0.0
    %1108 = vmatprep.subr.mxu0 0.0
    %1109 = vmatpush1.xpose.msra.mxu0 0.0
    %1110 = vmatprep.subr.mxu0 0.0
    %1111 = vmatpush1.xpose.msra.mxu0 0.0
    %1112 = vmatprep.subr.mxu0 0.0
    %1113 = vmatpush1.xpose.msra.mxu0 0.0
    %1114 = vmatprep.subr.mxu0 0.0
    %1115 = vmatpush1.xpose.msra.mxu0 0.0
    %1116 = vmatprep.subr.mxu0 0.0
    %1117 = vmatpush1.xpose.msra.mxu0 0.0
    %1118 = vmatprep.subr.mxu0 0.0
    %1119 = vmatpush1.xpose.msra.mxu0 0.0
    %1120 = vmatprep.subr.mxu0 0.0
    %1121 = vmatpush1.xpose.msra.mxu0 0.0
    %1122 = vmatprep.subr.mxu0 0.0
    %1123 = vmatpush1.xpose.msra.mxu0 0.0
    %1124 = vmatprep.subr.mxu0 0.0
    %1125 = vmatpush1.xpose.msra.mxu0 0.0
    %1126 = vmatprep.subr.mxu0 0.0
    %1127 = vmatpush1.xpose.msra.mxu0 0.0
    %1128 = vmatprep.subr.mxu0 0.0
    %1129 = vmatpush1.xpose.msra.mxu0 0.0
    %1130 = vmatprep.subr.mxu0 0.0
    %1131 = vmatpush1.xpose.msra.mxu0 0.0
    %1132 = vmatprep.subr.mxu0 0.0
    %1133 = vmatpush1.xpose.msra.mxu0 0.0
    %1134 = vmatprep.subr.mxu0 0.0
    %1135 = vmatpush1.xpose.msra.mxu0 0.0
    %1136 = vmatprep.mubr.f32.mxu0 0.0
    %1137 = vmatmul.mubr.f32.gmra.mrb[0].mxu0 %v1067
    %v1138 = vpop.f32.mrb[0].mxu0
    %v1139 = vadd.f32 0.0, %v1138
    %v1140 = vpop.f32.mrb[0].mxu0
    %1141 = vdwg.mxu0
    %v1142 = vsel %vm981, %v1139, -inf
    %1143 = vmax.xlane.f32.xlu0 %v1142
    %v1144 = vpop.xlane.xlu0 %1143
    %v1145 = vsub.f32 %v1139, %v1144
    %v1146 = vmul.f32 %v1145, 1.442695
    %v1147 = vpow.pop %v1146
    %v1148 = vsel %vm981, %v1147, 0.0
    %1149 = vadd.xlane.f32.xlu0 %v1148
    %v1150 = vpop.xlane.xlu0 %1149
    %v1151 = vrcp.pop %v1150
    %v1152 = vmul.f32 %v1147, %v1151
    %v1154 = vsel %vm981, %v1152, 0
    %1156 = vmatprep.subr.mxu0 0.0
    %1157 = vmatpush1.msra.mxu0 %v565
    %1158 = vmatprep.subr.mxu0 0.0
    %1159 = vmatpush1.msra.mxu0 0.0
    %1160 = vmatprep.subr.mxu0 0.0
    %1161 = vmatpush1.msra.mxu0 0.0
    %1162 = vmatprep.subr.mxu0 0.0
    %1163 = vmatpush1.msra.mxu0 0.0
    %1164 = vmatprep.subr.mxu0 0.0
    %1165 = vmatpush1.msra.mxu0 0.0
    %1166 = vmatprep.subr.mxu0 0.0
    %1167 = vmatpush1.msra.mxu0 0.0
    %1168 = vmatprep.subr.mxu0 0.0
    %1169 = vmatpush1.msra.mxu0 0.0
    %1170 = vmatprep.subr.mxu0 0.0
    %1171 = vmatpush1.msra.mxu0 0.0
    %1172 = vmatprep.subr.mxu0 0.0
    %1173 = vmatpush1.msra.mxu0 0.0
    %1174 = vmatprep.subr.mxu0 0.0
    %1175 = vmatpush1.msra.mxu0 0.0
    %1176 = vmatprep.subr.mxu0 0.0
    %1177 = vmatpush1.msra.mxu0 0.0
    %1178 = vmatprep.subr.mxu0 0.0
    %1179 = vmatpush1.msra.mxu0 0.0
    %1180 = vmatprep.subr.mxu0 0.0
    %1181 = vmatpush1.msra.mxu0 0.0
    %1182 = vmatprep.subr.mxu0 0.0
    %1183 = vmatpush1.msra.mxu0 0.0
    %1184 = vmatprep.subr.mxu0 0.0
    %1185 = vmatpush1.msra.mxu0 0.0
    %1186 = vmatprep.subr.mxu0 0.0
    %1187 = vmatpush1.msra.mxu0 0.0
    %1188 = vmatprep.subr.mxu0 0.0
    %1189 = vmatpush1.msra.mxu0 0.0
    %1190 = vmatprep.subr.mxu0 0.0
    %1191 = vmatpush1.msra.mxu0 0.0
    %1192 = vmatprep.subr.mxu0 0.0
    %1193 = vmatpush1.msra.mxu0 0.0
    %1194 = vmatprep.subr.mxu0 0.0
    %1195 = vmatpush1.msra.mxu0 0.0
    %1196 = vmatprep.subr.mxu0 0.0
    %1197 = vmatpush1.msra.mxu0 0.0
    %1198 = vmatprep.subr.mxu0 0.0
    %1199 = vmatpush1.msra.mxu0 0.0
    %1200 = vmatprep.subr.mxu0 0.0
    %1201 = vmatpush1.msra.mxu0 0.0
    %1202 = vmatprep.subr.mxu0 0.0
    %1203 = vmatpush1.msra.mxu0 0.0
    %1204 = vmatprep.subr.mxu0 0.0
    %1205 = vmatpush1.msra.mxu0 0.0
    %1206 = vmatprep.subr.mxu0 0.0
    %1207 = vmatpush1.msra.mxu0 0.0
    %1208 = vmatprep.subr.mxu0 0.0
    %1209 = vmatpush1.msra.mxu0 0.0
    %1210 = vmatprep.subr.mxu0 0.0
    %1211 = vmatpush1.msra.mxu0 0.0
    %1212 = vmatprep.subr.mxu0 0.0
    %1213 = vmatpush1.msra.mxu0 0.0
    %1214 = vmatprep.subr.mxu0 0.0
    %1215 = vmatpush1.msra.mxu0 0.0
    %1216 = vmatprep.subr.mxu0 0.0
    %1217 = vmatpush1.msra.mxu0 0.0
    %1218 = vmatprep.subr.mxu0 0.0
    %1219 = vmatpush1.msra.mxu0 0.0
    %1220 = vmatprep.mubr.f32.mxu0 0.0
    %1221 = vmatmul.mubr.f32.gmra.mrb[0].mxu0 %v1154
    %v1222 = vpop.f32.mrb[0].mxu0
    %v1223 = vadd.f32 0.0, %v1222
    %v1224 = vpop.f32.mrb[0].mxu0
    %1225 = vdwg.mxu0
    %v1226 = vld [vmem:[%s14] sm:$0xff]
    %v1227 = vld [vmem:[%s14 + $0x8] sm:$0xff]
    %v1228 = vld [vmem:[%s14 + $0x10] sm:$0xff]
    %v1229 = vld [vmem:[%s14 + $0x18] sm:$0xff]
    %v1230 = vld [vmem:[%s15] sm:$0x1]
    %v1232 = vlaneseq
    %v1233 = vshrl.u32 %v1232, 7
    %v1234 = vsub.s32 0, %v1233
    %v1235 = vrot.slane %v1230, %v1234
    %v1238 = vsel %vm82, %v1063, 0
    %v1241 = vsel %vm82, %v1223, 0
    %1243 = vmatprep.subr.mxu0 0.0
    %1244 = vmatpush1.msra.mxu0 %v1226
    %1245 = vmatprep.subr.mxu0 0.0
    %1246 = vmatpush1.msra.mxu0 %v1227
    %1247 = vmatprep.subr.mxu0 0.0
    %1248 = vmatpush1.msra.mxu0 %v1228
    %1249 = vmatprep.subr.mxu0 0.0
    %1250 = vmatpush1.msra.mxu0 %v1229
    %1251 = vmatprep.subr.mxu0 0.0
    %1252 = vmatpush1.msra.mxu0 0.0
    %1253 = vmatprep.subr.mxu0 0.0
    %1254 = vmatpush1.msra.mxu0 0.0
    %1255 = vmatprep.subr.mxu0 0.0
    %1256 = vmatpush1.msra.mxu0 0.0
    %1257 = vmatprep.subr.mxu0 0.0
    %1258 = vmatpush1.msra.mxu0 0.0
    %1259 = vmatprep.subr.mxu0 0.0
    %1260 = vmatpush1.msra.mxu0 0.0
    %1261 = vmatprep.subr.mxu0 0.0
    %1262 = vmatpush1.msra.mxu0 0.0
    %1263 = vmatprep.subr.mxu0 0.0
    %1264 = vmatpush1.msra.mxu0 0.0
    %1265 = vmatprep.subr.mxu0 0.0
    %1266 = vmatpush1.msra.mxu0 0.0
    %1267 = vmatprep.subr.mxu0 0.0
    %1268 = vmatpush1.msra.mxu0 0.0
    %1269 = vmatprep.subr.mxu0 0.0
    %1270 = vmatpush1.msra.mxu0 0.0
    %1271 = vmatprep.subr.mxu0 0.0
    %1272 = vmatpush1.msra.mxu0 0.0
    %1273 = vmatprep.subr.mxu0 0.0
    %1274 = vmatpush1.msra.mxu0 0.0
    %1275 = vmatprep.subr.mxu0 0.0
    %1276 = vmatpush1.msra.mxu0 0.0
    %1277 = vmatprep.subr.mxu0 0.0
    %1278 = vmatpush1.msra.mxu0 0.0
    %1279 = vmatprep.subr.mxu0 0.0
    %1280 = vmatpush1.msra.mxu0 0.0
    %1281 = vmatprep.subr.mxu0 0.0
    %1282 = vmatpush1.msra.mxu0 0.0
    %1283 = vmatprep.subr.mxu0 0.0
    %1284 = vmatpush1.msra.mxu0 0.0
    %1285 = vmatprep.subr.mxu0 0.0
    %1286 = vmatpush1.msra.mxu0 0.0
    %1287 = vmatprep.subr.mxu0 0.0
    %1288 = vmatpush1.msra.mxu0 0.0
    %1289 = vmatprep.subr.mxu0 0.0
    %1290 = vmatpush1.msra.mxu0 0.0
    %1291 = vmatprep.subr.mxu0 0.0
    %1292 = vmatpush1.msra.mxu0 0.0
    %1293 = vmatprep.subr.mxu0 0.0
    %1294 = vmatpush1.msra.mxu0 0.0
    %1295 = vmatprep.subr.mxu0 0.0
    %1296 = vmatpush1.msra.mxu0 0.0
    %1297 = vmatprep.subr.mxu0 0.0
    %1298 = vmatpush1.msra.mxu0 0.0
    %1299 = vmatprep.subr.mxu0 0.0
    %1300 = vmatpush1.msra.mxu0 0.0
    %1301 = vmatprep.subr.mxu0 0.0
    %1302 = vmatpush1.msra.mxu0 0.0
    %1303 = vmatprep.subr.mxu0 0.0
    %1304 = vmatpush1.msra.mxu0 0.0
    %1305 = vmatprep.subr.mxu0 0.0
    %1306 = vmatpush1.msra.mxu0 0.0
    %1307 = vmatprep.mubr.f32.mxu0 0.0
    %1308 = vmatmul.mubr.f32.gmra.mrb[0].mxu0 %v1238
    %v1309 = vpop.f32.mrb[0].mxu0
    %v1310 = vadd.f32 %v1235, %v1309
    %v1311 = vpop.f32.mrb[0].mxu0
    %1312 = vmatprep.mubr.f32.mxu0 0.0
    %1313 = vmatmul.mubr.f32.gmra.mrb[0].mxu0 %v1241
    %v1314 = vpop.f32.mrb[0].mxu0
    %v1315 = vadd.f32 %v1235, %v1314
    %v1316 = vpop.f32.mrb[0].mxu0
    %1317 = vdwg.mxu0
    %v1318 = vadd.f32 %v807, %v1310
    %v1319 = vadd.f32 %v808, %v1315
    %v1320 = vmul.f32 %v1318, 0.70710677
    %v1321 = vmul.f32 %v1319, 0.70710677
    %v1322 = vadd.f32 %v1320, %v652
    %v1323 = vadd.f32 %v1321, %v657
    %v1324 = vmul.f32 %v1322, 0.70710677
    %v1325 = vmul.f32 %v1323, 0.70710677
    %1326 = vst.msk [vmem:[#allocation2] sm:$0xff] %vm164, 0.0
    %1327 = vst.msk [vmem:[#allocation2 + $0x8] sm:$0xff] %vm164, 0.0
    %1328 = vst.msk [vmem:[#allocation2 + $0x2] sm:$0x3f] %vm662, %v1324
    %1330 = vrot.lane.b32.xlu0 %v1324, 32
    %v1331 = vpop.permute.xlu0 %1330
    %1333 = vst.msk [vmem:[#allocation2 + $0x1] sm:$0x7f] %vm668, %v1331
    %1334 = vrot.lane.b32.xlu0 %v1324, 64
    %v1335 = vpop.permute.xlu0 %1334
    %1337 = vst.msk [vmem:[#allocation2] sm:$0xff] %vm673, %v1335
    %1338 = vst.msk [vmem:[#allocation2 + $0xa] sm:$0x3f] %vm662, %v1325
    %1340 = vrot.lane.b32.xlu0 %v1325, 32
    %v1341 = vpop.permute.xlu0 %1340
    %1343 = vst.msk [vmem:[#allocation2 + $0x9] sm:$0x7f] %vm668, %v1341
    %1344 = vrot.lane.b32.xlu0 %v1325, 64
    %v1345 = vpop.permute.xlu0 %1344
    %1347 = vst.msk [vmem:[#allocation2 + $0x8] sm:$0xff] %vm673, %v1345
    %v1348 = vld [vmem:[#allocation2] sm:$0xff]
    %v1349 = vld [vmem:[#allocation2 + $0x8] sm:$0xff]
    %s1350 = scalar_lea.vmem %s10, 96
    %v1351 = vld [vmem:[%s1350] sm:$0xff]
    %v1352 = vld [vmem:[%s1350 + $0x8] sm:$0xff]
    %v1353 = vld [vmem:[%s1350 + $0x10] sm:$0xff]
    %v1354 = vld [vmem:[%s1350 + $0x18] sm:$0xff]
    %v1355 = vld [vmem:[%s1350 + $0x20] sm:$0xff]
    %v1356 = vld [vmem:[%s1350 + $0x28] sm:$0xff]
    %v1357 = vld [vmem:[%s1350 + $0x30] sm:$0xff]
    %v1358 = vld [vmem:[%s1350 + $0x38] sm:$0xff]
    %v1359 = vld [vmem:[%s1350 + $0x40] sm:$0xff]
    %v1360 = vld [vmem:[%s1350 + $0x48] sm:$0xff]
    %v1361 = vld [vmem:[%s1350 + $0x50] sm:$0xff]
    %v1362 = vld [vmem:[%s1350 + $0x58] sm:$0xff]
    %s1363 = scalar_lea.vmem %s11, 1
    %v1364 = vld [vmem:[%s1363] sm:$0x1]
    %v1366 = vlaneseq
    %v1367 = vshrl.u32 %v1366, 7
    %v1368 = vsub.s32 0, %v1367
    %v1369 = vrot.slane %v1364, %v1368
    %v1372 = vsel %vm164, %v1348, 0
    %v1375 = vsel %vm164, %v1349, 0
    %1377 = vmatprep.subr.mxu0 0.0
    %1378 = vmatpush1.msra.mxu0 %v1351
    %1379 = vmatprep.subr.mxu0 0.0
    %1380 = vmatpush1.msra.mxu0 %v1352
    %1381 = vmatprep.subr.mxu0 0.0
    %1382 = vmatpush1.msra.mxu0 %v1353
    %1383 = vmatprep.subr.mxu0 0.0
    %1384 = vmatpush1.msra.mxu0 %v1354
    %1385 = vmatprep.subr.mxu0 0.0
    %1386 = vmatpush1.msra.mxu0 %v1355
    %1387 = vmatprep.subr.mxu0 0.0
    %1388 = vmatpush1.msra.mxu0 %v1356
    %1389 = vmatprep.subr.mxu0 0.0
    %1390 = vmatpush1.msra.mxu0 %v1357
    %1391 = vmatprep.subr.mxu0 0.0
    %1392 = vmatpush1.msra.mxu0 %v1358
    %1393 = vmatprep.subr.mxu0 0.0
    %1394 = vmatpush1.msra.mxu0 %v1359
    %1395 = vmatprep.subr.mxu0 0.0
    %1396 = vmatpush1.msra.mxu0 %v1360
    %1397 = vmatprep.subr.mxu0 0.0
    %1398 = vmatpush1.msra.mxu0 %v1361
    %1399 = vmatprep.subr.mxu0 0.0
    %1400 = vmatpush1.msra.mxu0 %v1362
    %1401 = vmatprep.subr.mxu0 0.0
    %1402 = vmatpush1.msra.mxu0 0.0
    %1403 = vmatprep.subr.mxu0 0.0
    %1404 = vmatpush1.msra.mxu0 0.0
    %1405 = vmatprep.subr.mxu0 0.0
    %1406 = vmatpush1.msra.mxu0 0.0
    %1407 = vmatprep.subr.mxu0 0.0
    %1408 = vmatpush1.msra.mxu0 0.0
    %1409 = vmatprep.subr.mxu0 0.0
    %1410 = vmatpush1.msra.mxu0 0.0
    %1411 = vmatprep.subr.mxu0 0.0
    %1412 = vmatpush1.msra.mxu0 0.0
    %1413 = vmatprep.subr.mxu0 0.0
    %1414 = vmatpush1.msra.mxu0 0.0
    %1415 = vmatprep.subr.mxu0 0.0
    %1416 = vmatpush1.msra.mxu0 0.0
    %1417 = vmatprep.subr.mxu0 0.0
    %1418 = vmatpush1.msra.mxu0 0.0
    %1419 = vmatprep.subr.mxu0 0.0
    %1420 = vmatpush1.msra.mxu0 0.0
    %1421 = vmatprep.subr.mxu0 0.0
    %1422 = vmatpush1.msra.mxu0 0.0
    %1423 = vmatprep.subr.mxu0 0.0
    %1424 = vmatpush1.msra.mxu0 0.0
    %1425 = vmatprep.subr.mxu0 0.0
    %1426 = vmatpush1.msra.mxu0 0.0
    %1427 = vmatprep.subr.mxu0 0.0
    %1428 = vmatpush1.msra.mxu0 0.0
    %1429 = vmatprep.subr.mxu0 0.0
    %1430 = vmatpush1.msra.mxu0 0.0
    %1431 = vmatprep.subr.mxu0 0.0
    %1432 = vmatpush1.msra.mxu0 0.0
    %1433 = vmatprep.subr.mxu0 0.0
    %1434 = vmatpush1.msra.mxu0 0.0
    %1435 = vmatprep.subr.mxu0 0.0
    %1436 = vmatpush1.msra.mxu0 0.0
    %1437 = vmatprep.subr.mxu0 0.0
    %1438 = vmatpush1.msra.mxu0 0.0
    %1439 = vmatprep.subr.mxu0 0.0
    %1440 = vmatpush1.msra.mxu0 0.0
    %1441 = vmatprep.mubr.f32.mxu0 0.0
    %1442 = vmatmul.mubr.f32.gmra.mrb[0].mxu0 %v1372
    %v1443 = vpop.f32.mrb[0].mxu0
    %v1444 = vadd.f32 %v1369, %v1443
    %v1445 = vpop.f32.mrb[0].mxu0
    %1446 = vmatprep.mubr.f32.mxu0 0.0
    %1447 = vmatmul.mubr.f32.gmra.mrb[0].mxu0 %v1375
    %v1448 = vpop.f32.mrb[0].mxu0
    %v1449 = vadd.f32 %v1369, %v1448
    %v1450 = vpop.f32.mrb[0].mxu0
    %1451 = vdwg.mxu0
    %v1452 = vxor.u32 %v1444, 2147483648
    %v1453 = vxor.u32 %v1449, 2147483648
    %v1454 = vmul.f32 %v1452, 1.442695
    %v1455 = vpow.pop %v1454
    %v1456 = vmul.f32 %v1453, 1.442695
    %v1457 = vpow.pop %v1456
    %v1458 = vadd.f32 %v1455, 1.0
    %v1459 = vadd.f32 %v1457, 1.0
    %v1460 = vrcp.pop %v1458
    %v1461 = vmul.f32 1.0, %v1460
    %v1462 = vrcp.pop %v1459
    %v1463 = vmul.f32 1.0, %v1462
    %1466 = vrot.lane.b32.xlu0 %v1461, 96
    %v1467 = vpop.permute.xlu0 %1466
    %1468 = vrot.lane.b32.xlu0 %v1463, 96
    %v1469 = vpop.permute.xlu0 %1468
    %v1472 = vmul.f32 %v1444, %v1467
    %v1473 = vmul.f32 %v1449, %v1469
    %v1474 = vld [vmem:[%s12] sm:$0xff]
    %v1475 = vld [vmem:[%s12 + $0x8] sm:$0xff]
    %v1476 = vld [vmem:[%s12 + $0x10] sm:$0xff]
    %v1477 = vld [vmem:[%s12 + $0x18] sm:$0xff]
    %v1478 = vld [vmem:[%s13] sm:$0x1]
    %v1480 = vlaneseq
    %v1481 = vshrl.u32 %v1480, 7
    %v1482 = vsub.s32 0, %v1481
    %v1483 = vrot.slane %v1478, %v1482
    %v1486 = vsel %vm82, %v1472, 0
    %v1489 = vsel %vm82, %v1473, 0
    %1491 = vmatprep.subr.mxu0 0.0
    %1492 = vmatpush1.msra.mxu0 %v1474
    %1493 = vmatprep.subr.mxu0 0.0
    %1494 = vmatpush1.msra.mxu0 %v1475
    %1495 = vmatprep.subr.mxu0 0.0
    %1496 = vmatpush1.msra.mxu0 %v1476
    %1497 = vmatprep.subr.mxu0 0.0
    %1498 = vmatpush1.msra.mxu0 %v1477
    %1499 = vmatprep.subr.mxu0 0.0
    %1500 = vmatpush1.msra.mxu0 0.0
    %1501 = vmatprep.subr.mxu0 0.0
    %1502 = vmatpush1.msra.mxu0 0.0
    %1503 = vmatprep.subr.mxu0 0.0
    %1504 = vmatpush1.msra.mxu0 0.0
    %1505 = vmatprep.subr.mxu0 0.0
    %1506 = vmatpush1.msra.mxu0 0.0
    %1507 = vmatprep.subr.mxu0 0.0
    %1508 = vmatpush1.msra.mxu0 0.0
    %1509 = vmatprep.subr.mxu0 0.0
    %1510 = vmatpush1.msra.mxu0 0.0
    %1511 = vmatprep.subr.mxu0 0.0
    %1512 = vmatpush1.msra.mxu0 0.0
    %1513 = vmatprep.subr.mxu0 0.0
    %1514 = vmatpush1.msra.mxu0 0.0
    %1515 = vmatprep.subr.mxu0 0.0
    %1516 = vmatpush1.msra.mxu0 0.0
    %1517 = vmatprep.subr.mxu0 0.0
    %1518 = vmatpush1.msra.mxu0 0.0
    %1519 = vmatprep.subr.mxu0 0.0
    %1520 = vmatpush1.msra.mxu0 0.0
    %1521 = vmatprep.subr.mxu0 0.0
    %1522 = vmatpush1.msra.mxu0 0.0
    %1523 = vmatprep.subr.mxu0 0.0
    %1524 = vmatpush1.msra.mxu0 0.0
    %1525 = vmatprep.subr.mxu0 0.0
    %1526 = vmatpush1.msra.mxu0 0.0
    %1527 = vmatprep.subr.mxu0 0.0
    %1528 = vmatpush1.msra.mxu0 0.0
    %1529 = vmatprep.subr.mxu0 0.0
    %1530 = vmatpush1.msra.mxu0 0.0
    %1531 = vmatprep.subr.mxu0 0.0
    %1532 = vmatpush1.msra.mxu0 0.0
    %1533 = vmatprep.subr.mxu0 0.0
    %1534 = vmatpush1.msra.mxu0 0.0
    %1535 = vmatprep.subr.mxu0 0.0
    %1536 = vmatpush1.msra.mxu0 0.0
    %1537 = vmatprep.subr.mxu0 0.0
    %1538 = vmatpush1.msra.mxu0 0.0
    %1539 = vmatprep.subr.mxu0 0.0
    %1540 = vmatpush1.msra.mxu0 0.0
    %1541 = vmatprep.subr.mxu0 0.0
    %1542 = vmatpush1.msra.mxu0 0.0
    %1543 = vmatprep.subr.mxu0 0.0
    %1544 = vmatpush1.msra.mxu0 0.0
    %1545 = vmatprep.subr.mxu0 0.0
    %1546 = vmatpush1.msra.mxu0 0.0
    %1547 = vmatprep.subr.mxu0 0.0
    %1548 = vmatpush1.msra.mxu0 0.0
    %1549 = vmatprep.subr.mxu0 0.0
    %1550 = vmatpush1.msra.mxu0 0.0
    %1551 = vmatprep.subr.mxu0 0.0
    %1552 = vmatpush1.msra.mxu0 0.0
    %1553 = vmatprep.subr.mxu0 0.0
    %1554 = vmatpush1.msra.mxu0 0.0
    %1555 = vmatprep.mubr.f32.mxu0 0.0
    %1556 = vmatmul.mubr.f32.gmra.mrb[0].mxu0 %v1486
    %v1557 = vpop.f32.mrb[0].mxu0
    %v1558 = vadd.f32 %v1483, %v1557
    %v1559 = vpop.f32.mrb[0].mxu0
    %1560 = vmatprep.mubr.f32.mxu0 0.0
    %1561 = vmatmul.mubr.f32.gmra.mrb[0].mxu0 %v1489
    %v1562 = vpop.f32.mrb[0].mxu0
    %v1563 = vadd.f32 %v1483, %v1562
    %v1564 = vpop.f32.mrb[0].mxu0
    %1565 = vdwg.mxu0
    %v1566 = vadd.f32 %v1558, %v566
    %v1567 = vadd.f32 %v1563, %v567
    %v1568 = vmul.f32 %v1566, 0.70710677
    %v1569 = vmul.f32 %v1567, 0.70710677
    %v1571 = vsel %vm82, %v1568, 0
    %1573 = vmatprep.subr.mxu0 0.0
    %1574 = vmatpush1.xpose.msra.mxu0 %v909
    %1575 = vmatprep.subr.mxu0 0.0
    %1576 = vmatpush1.xpose.msra.mxu0 0.0
    %1577 = vmatprep.subr.mxu0 0.0
    %1578 = vmatpush1.xpose.msra.mxu0 0.0
    %1579 = vmatprep.subr.mxu0 0.0
    %1580 = vmatpush1.xpose.msra.mxu0 0.0
    %1581 = vmatprep.subr.mxu0 0.0
    %1582 = vmatpush1.xpose.msra.mxu0 0.0
    %1583 = vmatprep.subr.mxu0 0.0
    %1584 = vmatpush1.xpose.msra.mxu0 0.0
    %1585 = vmatprep.subr.mxu0 0.0
    %1586 = vmatpush1.xpose.msra.mxu0 0.0
    %1587 = vmatprep.subr.mxu0 0.0
    %1588 = vmatpush1.xpose.msra.mxu0 0.0
    %1589 = vmatprep.subr.mxu0 0.0
    %1590 = vmatpush1.xpose.msra.mxu0 0.0
    %1591 = vmatprep.subr.mxu0 0.0
    %1592 = vmatpush1.xpose.msra.mxu0 0.0
    %1593 = vmatprep.subr.mxu0 0.0
    %1594 = vmatpush1.xpose.msra.mxu0 0.0
    %1595 = vmatprep.subr.mxu0 0.0
    %1596 = vmatpush1.xpose.msra.mxu0 0.0
    %1597 = vmatprep.subr.mxu0 0.0
    %1598 = vmatpush1.xpose.msra.mxu0 0.0
    %1599 = vmatprep.subr.mxu0 0.0
    %1600 = vmatpush1.xpose.msra.mxu0 0.0
    %1601 = vmatprep.subr.mxu0 0.0
    %1602 = vmatpush1.xpose.msra.mxu0 0.0
    %1603 = vmatprep.subr.mxu0 0.0
    %1604 = vmatpush1.xpose.msra.mxu0 0.0
    %1605 = vmatprep.subr.mxu0 0.0
    %1606 = vmatpush1.xpose.msra.mxu0 0.0
    %1607 = vmatprep.subr.mxu0 0.0
    %1608 = vmatpush1.xpose.msra.mxu0 0.0
    %1609 = vmatprep.subr.mxu0 0.0
    %1610 = vmatpush1.xpose.msra.mxu0 0.0
    %1611 = vmatprep.subr.mxu0 0.0
    %1612 = vmatpush1.xpose.msra.mxu0 0.0
    %1613 = vmatprep.subr.mxu0 0.0
    %1614 = vmatpush1.xpose.msra.mxu0 0.0
    %1615 = vmatprep.subr.mxu0 0.0
    %1616 = vmatpush1.xpose.msra.mxu0 0.0
    %1617 = vmatprep.subr.mxu0 0.0
    %1618 = vmatpush1.xpose.msra.mxu0 0.0
    %1619 = vmatprep.subr.mxu0 0.0
    %1620 = vmatpush1.xpose.msra.mxu0 0.0
    %1621 = vmatprep.subr.mxu0 0.0
    %1622 = vmatpush1.xpose.msra.mxu0 0.0
    %1623 = vmatprep.subr.mxu0 0.0
    %1624 = vmatpush1.xpose.msra.mxu0 0.0
    %1625 = vmatprep.subr.mxu0 0.0
    %1626 = vmatpush1.xpose.msra.mxu0 0.0
    %1627 = vmatprep.subr.mxu0 0.0
    %1628 = vmatpush1.xpose.msra.mxu0 0.0
    %1629 = vmatprep.subr.mxu0 0.0
    %1630 = vmatpush1.xpose.msra.mxu0 0.0
    %1631 = vmatprep.subr.mxu0 0.0
    %1632 = vmatpush1.xpose.msra.mxu0 0.0
    %1633 = vmatprep.subr.mxu0 0.0
    %1634 = vmatpush1.xpose.msra.mxu0 0.0
    %1635 = vmatprep.subr.mxu0 0.0
    %1636 = vmatpush1.xpose.msra.mxu0 0.0
    %1637 = vmatprep.mubr.f32.mxu0 0.0
    %1638 = vmatmul.mubr.f32.gmra.mrb[0].mxu0 %v1571
    %v1639 = vpop.f32.mrb[0].mxu0
    %v1640 = vadd.f32 0.0, %v1639
    %v1641 = vpop.f32.mrb[0].mxu0
    %1642 = vdwg.mxu0
    %v1643 = vsel %vm981, %v1640, -inf
    %1644 = vmax.xlane.f32.xlu0 %v1643
    %v1645 = vpop.xlane.xlu0 %1644
    %v1646 = vsub.f32 %v1640, %v1645
    %v1647 = vmul.f32 %v1646, 1.442695
    %v1648 = vpow.pop %v1647
    %v1649 = vsel %vm981, %v1648, 0.0
    %1650 = vadd.xlane.f32.xlu0 %v1649
    %v1651 = vpop.xlane.xlu0 %1650
    %v1652 = vrcp.pop %v1651
    %v1653 = vmul.f32 %v1648, %v1652
    %1654 = vst.msk [vmem:[#allocation5] sm:$0xff] %vm981, %v1653
    %v1656 = vsel %vm981, %v1653, 0
    %1658 = vmatprep.subr.mxu0 0.0
    %1659 = vmatpush1.msra.mxu0 %v564
    %1660 = vmatprep.subr.mxu0 0.0
    %1661 = vmatpush1.msra.mxu0 0.0
    %1662 = vmatprep.subr.mxu0 0.0
    %1663 = vmatpush1.msra.mxu0 0.0
    %1664 = vmatprep.subr.mxu0 0.0
    %1665 = vmatpush1.msra.mxu0 0.0
    %1666 = vmatprep.subr.mxu0 0.0
    %1667 = vmatpush1.msra.mxu0 0.0
    %1668 = vmatprep.subr.mxu0 0.0
    %1669 = vmatpush1.msra.mxu0 0.0
    %1670 = vmatprep.subr.mxu0 0.0
    %1671 = vmatpush1.msra.mxu0 0.0
    %1672 = vmatprep.subr.mxu0 0.0
    %1673 = vmatpush1.msra.mxu0 0.0
    %1674 = vmatprep.subr.mxu0 0.0
    %1675 = vmatpush1.msra.mxu0 0.0
    %1676 = vmatprep.subr.mxu0 0.0
    %1677 = vmatpush1.msra.mxu0 0.0
    %1678 = vmatprep.subr.mxu0 0.0
    %1679 = vmatpush1.msra.mxu0 0.0
    %1680 = vmatprep.subr.mxu0 0.0
    %1681 = vmatpush1.msra.mxu0 0.0
    %1682 = vmatprep.subr.mxu0 0.0
    %1683 = vmatpush1.msra.mxu0 0.0
    %1684 = vmatprep.subr.mxu0 0.0
    %1685 = vmatpush1.msra.mxu0 0.0
    %1686 = vmatprep.subr.mxu0 0.0
    %1687 = vmatpush1.msra.mxu0 0.0
    %1688 = vmatprep.subr.mxu0 0.0
    %1689 = vmatpush1.msra.mxu0 0.0
    %1690 = vmatprep.subr.mxu0 0.0
    %1691 = vmatpush1.msra.mxu0 0.0
    %1692 = vmatprep.subr.mxu0 0.0
    %1693 = vmatpush1.msra.mxu0 0.0
    %1694 = vmatprep.subr.mxu0 0.0
    %1695 = vmatpush1.msra.mxu0 0.0
    %1696 = vmatprep.subr.mxu0 0.0
    %1697 = vmatpush1.msra.mxu0 0.0
    %1698 = vmatprep.subr.mxu0 0.0
    %1699 = vmatpush1.msra.mxu0 0.0
    %1700 = vmatprep.subr.mxu0 0.0
    %1701 = vmatpush1.msra.mxu0 0.0
    %1702 = vmatprep.subr.mxu0 0.0
    %1703 = vmatpush1.msra.mxu0 0.0
    %1704 = vmatprep.subr.mxu0 0.0
    %1705 = vmatpush1.msra.mxu0 0.0
    %1706 = vmatprep.subr.mxu0 0.0
    %1707 = vmatpush1.msra.mxu0 0.0
    %1708 = vmatprep.subr.mxu0 0.0
    %1709 = vmatpush1.msra.mxu0 0.0
    %1710 = vmatprep.subr.mxu0 0.0
    %1711 = vmatpush1.msra.mxu0 0.0
    %1712 = vmatprep.subr.mxu0 0.0
    %1713 = vmatpush1.msra.mxu0 0.0
    %1714 = vmatprep.subr.mxu0 0.0
    %1715 = vmatpush1.msra.mxu0 0.0
    %1716 = vmatprep.subr.mxu0 0.0
    %1717 = vmatpush1.msra.mxu0 0.0
    %1718 = vmatprep.subr.mxu0 0.0
    %1719 = vmatpush1.msra.mxu0 0.0
    %1720 = vmatprep.subr.mxu0 0.0
    %1721 = vmatpush1.msra.mxu0 0.0
    %1722 = vmatprep.mubr.f32.mxu0 0.0
    %1723 = vmatmul.mubr.f32.gmra.mrb[0].mxu0 %v1656
    %v1724 = vpop.f32.mrb[0].mxu0
    %v1725 = vadd.f32 0.0, %v1724
    %v1726 = vpop.f32.mrb[0].mxu0
    %1727 = vdwg.mxu0
    %v1729 = vsel %vm82, %v1569, 0
    %1731 = vmatprep.subr.mxu0 0.0
    %1732 = vmatpush1.xpose.msra.mxu0 %v1070
    %1733 = vmatprep.subr.mxu0 0.0
    %1734 = vmatpush1.xpose.msra.mxu0 0.0
    %1735 = vmatprep.subr.mxu0 0.0
    %1736 = vmatpush1.xpose.msra.mxu0 0.0
    %1737 = vmatprep.subr.mxu0 0.0
    %1738 = vmatpush1.xpose.msra.mxu0 0.0
    %1739 = vmatprep.subr.mxu0 0.0
    %1740 = vmatpush1.xpose.msra.mxu0 0.0
    %1741 = vmatprep.subr.mxu0 0.0
    %1742 = vmatpush1.xpose.msra.mxu0 0.0
    %1743 = vmatprep.subr.mxu0 0.0
    %1744 = vmatpush1.xpose.msra.mxu0 0.0
    %1745 = vmatprep.subr.mxu0 0.0
    %1746 = vmatpush1.xpose.msra.mxu0 0.0
    %1747 = vmatprep.subr.mxu0 0.0
    %1748 = vmatpush1.xpose.msra.mxu0 0.0
    %1749 = vmatprep.subr.mxu0 0.0
    %1750 = vmatpush1.xpose.msra.mxu0 0.0
    %1751 = vmatprep.subr.mxu0 0.0
    %1752 = vmatpush1.xpose.msra.mxu0 0.0
    %1753 = vmatprep.subr.mxu0 0.0
    %1754 = vmatpush1.xpose.msra.mxu0 0.0
    %1755 = vmatprep.subr.mxu0 0.0
    %1756 = vmatpush1.xpose.msra.mxu0 0.0
    %1757 = vmatprep.subr.mxu0 0.0
    %1758 = vmatpush1.xpose.msra.mxu0 0.0
    %1759 = vmatprep.subr.mxu0 0.0
    %1760 = vmatpush1.xpose.msra.mxu0 0.0
    %1761 = vmatprep.subr.mxu0 0.0
    %1762 = vmatpush1.xpose.msra.mxu0 0.0
    %1763 = vmatprep.subr.mxu0 0.0
    %1764 = vmatpush1.xpose.msra.mxu0 0.0
    %1765 = vmatprep.subr.mxu0 0.0
    %1766 = vmatpush1.xpose.msra.mxu0 0.0
    %1767 = vmatprep.subr.mxu0 0.0
    %1768 = vmatpush1.xpose.msra.mxu0 0.0
    %1769 = vmatprep.subr.mxu0 0.0
    %1770 = vmatpush1.xpose.msra.mxu0 0.0
    %1771 = vmatprep.subr.mxu0 0.0
    %1772 = vmatpush1.xpose.msra.mxu0 0.0
    %1773 = vmatprep.subr.mxu0 0.0
    %1774 = vmatpush1.xpose.msra.mxu0 0.0
    %1775 = vmatprep.subr.mxu0 0.0
    %1776 = vmatpush1.xpose.msra.mxu0 0.0
    %1777 = vmatprep.subr.mxu0 0.0
    %1778 = vmatpush1.xpose.msra.mxu0 0.0
    %1779 = vmatprep.subr.mxu0 0.0
    %1780 = vmatpush1.xpose.msra.mxu0 0.0
    %1781 = vmatprep.subr.mxu0 0.0
    %1782 = vmatpush1.xpose.msra.mxu0 0.0
    %1783 = vmatprep.subr.mxu0 0.0
    %1784 = vmatpush1.xpose.msra.mxu0 0.0
    %1785 = vmatprep.subr.mxu0 0.0
    %1786 = vmatpush1.xpose.msra.mxu0 0.0
    %1787 = vmatprep.subr.mxu0 0.0
    %1788 = vmatpush1.xpose.msra.mxu0 0.0
    %1789 = vmatprep.subr.mxu0 0.0
    %1790 = vmatpush1.xpose.msra.mxu0 0.0
    %1791 = vmatprep.subr.mxu0 0.0
    %1792 = vmatpush1.xpose.msra.mxu0 0.0
    %1793 = vmatprep.subr.mxu0 0.0
    %1794 = vmatpush1.xpose.msra.mxu0 0.0
    %1795 = vmatprep.mubr.f32.mxu0 0.0
    %1796 = vmatmul.mubr.f32.gmra.mrb[0].mxu0 %v1729
    %v1797 = vpop.f32.mrb[0].mxu0
    %v1798 = vadd.f32 0.0, %v1797
    %v1799 = vpop.f32.mrb[0].mxu0
    %1800 = vdwg.mxu0
    %v1801 = vsel %vm981, %v1798, -inf
    %1802 = vmax.xlane.f32.xlu0 %v1801
    %v1803 = vpop.xlane.xlu0 %1802
    %v1804 = vsub.f32 %v1798, %v1803
    %v1805 = vmul.f32 %v1804, 1.442695
    %v1806 = vpow.pop %v1805
    %v1807 = vsel %vm981, %v1806, 0.0
    %1808 = vadd.xlane.f32.xlu0 %v1807
    %v1809 = vpop.xlane.xlu0 %1808
    %v1810 = vrcp.pop %v1809
    %v1811 = vmul.f32 %v1806, %v1810
    %1812 = vst.msk [vmem:[#allocation5 + $0x8] sm:$0xff] %vm981, %v1811
    %v1814 = vsel %vm981, %v1811, 0
    %1816 = vmatprep.subr.mxu0 0.0
    %1817 = vmatpush1.msra.mxu0 %v565
    %1818 = vmatprep.subr.mxu0 0.0
    %1819 = vmatpush1.msra.mxu0 0.0
    %1820 = vmatprep.subr.mxu0 0.0
    %1821 = vmatpush1.msra.mxu0 0.0
    %1822 = vmatprep.subr.mxu0 0.0
    %1823 = vmatpush1.msra.mxu0 0.0
    %1824 = vmatprep.subr.mxu0 0.0
    %1825 = vmatpush1.msra.mxu0 0.0
    %1826 = vmatprep.subr.mxu0 0.0
    %1827 = vmatpush1.msra.mxu0 0.0
    %1828 = vmatprep.subr.mxu0 0.0
    %1829 = vmatpush1.msra.mxu0 0.0
    %1830 = vmatprep.subr.mxu0 0.0
    %1831 = vmatpush1.msra.mxu0 0.0
    %1832 = vmatprep.subr.mxu0 0.0
    %1833 = vmatpush1.msra.mxu0 0.0
    %1834 = vmatprep.subr.mxu0 0.0
    %1835 = vmatpush1.msra.mxu0 0.0
    %1836 = vmatprep.subr.mxu0 0.0
    %1837 = vmatpush1.msra.mxu0 0.0
    %1838 = vmatprep.subr.mxu0 0.0
    %1839 = vmatpush1.msra.mxu0 0.0
    %1840 = vmatprep.subr.mxu0 0.0
    %1841 = vmatpush1.msra.mxu0 0.0
    %1842 = vmatprep.subr.mxu0 0.0
    %1843 = vmatpush1.msra.mxu0 0.0
    %1844 = vmatprep.subr.mxu0 0.0
    %1845 = vmatpush1.msra.mxu0 0.0
    %1846 = vmatprep.subr.mxu0 0.0
    %1847 = vmatpush1.msra.mxu0 0.0
    %1848 = vmatprep.subr.mxu0 0.0
    %1849 = vmatpush1.msra.mxu0 0.0
    %1850 = vmatprep.subr.mxu0 0.0
    %1851 = vmatpush1.msra.mxu0 0.0
    %1852 = vmatprep.subr.mxu0 0.0
    %1853 = vmatpush1.msra.mxu0 0.0
    %1854 = vmatprep.subr.mxu0 0.0
    %1855 = vmatpush1.msra.mxu0 0.0
    %1856 = vmatprep.subr.mxu0 0.0
    %1857 = vmatpush1.msra.mxu0 0.0
    %1858 = vmatprep.subr.mxu0 0.0
    %1859 = vmatpush1.msra.mxu0 0.0
    %1860 = vmatprep.subr.mxu0 0.0
    %1861 = vmatpush1.msra.mxu0 0.0
    %1862 = vmatprep.subr.mxu0 0.0
    %1863 = vmatpush1.msra.mxu0 0.0
    %1864 = vmatprep.subr.mxu0 0.0
    %1865 = vmatpush1.msra.mxu0 0.0
    %1866 = vmatprep.subr.mxu0 0.0
    %1867 = vmatpush1.msra.mxu0 0.0
    %1868 = vmatprep.subr.mxu0 0.0
    %1869 = vmatpush1.msra.mxu0 0.0
    %1870 = vmatprep.subr.mxu0 0.0
    %1871 = vmatpush1.msra.mxu0 0.0
    %1872 = vmatprep.subr.mxu0 0.0
    %1873 = vmatpush1.msra.mxu0 0.0
    %1874 = vmatprep.subr.mxu0 0.0
    %1875 = vmatpush1.msra.mxu0 0.0
    %1876 = vmatprep.subr.mxu0 0.0
    %1877 = vmatpush1.msra.mxu0 0.0
    %1878 = vmatprep.subr.mxu0 0.0
    %1879 = vmatpush1.msra.mxu0 0.0
    %1880 = vmatprep.mubr.f32.mxu0 0.0
    %1881 = vmatmul.mubr.f32.gmra.mrb[0].mxu0 %v1814
    %v1882 = vpop.f32.mrb[0].mxu0
    %v1883 = vadd.f32 0.0, %v1882
    %v1884 = vpop.f32.mrb[0].mxu0
    %1885 = vdwg.mxu0
    %v1886 = vld [vmem:[%s14] sm:$0xff]
    %v1887 = vld [vmem:[%s14 + $0x8] sm:$0xff]
    %v1888 = vld [vmem:[%s14 + $0x10] sm:$0xff]
    %v1889 = vld [vmem:[%s14 + $0x18] sm:$0xff]
    %v1890 = vld [vmem:[%s15] sm:$0x1]
    %v1892 = vlaneseq
    %v1893 = vshrl.u32 %v1892, 7
    %v1894 = vsub.s32 0, %v1893
    %v1895 = vrot.slane %v1890, %v1894
    %v1898 = vsel %vm82, %v1725, 0
    %v1901 = vsel %vm82, %v1883, 0
    %1903 = vmatprep.subr.mxu0 0.0
    %1904 = vmatpush1.msra.mxu0 %v1886
    %1905 = vmatprep.subr.mxu0 0.0
    %1906 = vmatpush1.msra.mxu0 %v1887
    %1907 = vmatprep.subr.mxu0 0.0
    %1908 = vmatpush1.msra.mxu0 %v1888
    %1909 = vmatprep.subr.mxu0 0.0
    %1910 = vmatpush1.msra.mxu0 %v1889
    %1911 = vmatprep.subr.mxu0 0.0
    %1912 = vmatpush1.msra.mxu0 0.0
    %1913 = vmatprep.subr.mxu0 0.0
    %1914 = vmatpush1.msra.mxu0 0.0
    %1915 = vmatprep.subr.mxu0 0.0
    %1916 = vmatpush1.msra.mxu0 0.0
    %1917 = vmatprep.subr.mxu0 0.0
    %1918 = vmatpush1.msra.mxu0 0.0
    %1919 = vmatprep.subr.mxu0 0.0
    %1920 = vmatpush1.msra.mxu0 0.0
    %1921 = vmatprep.subr.mxu0 0.0
    %1922 = vmatpush1.msra.mxu0 0.0
    %1923 = vmatprep.subr.mxu0 0.0
    %1924 = vmatpush1.msra.mxu0 0.0
    %1925 = vmatprep.subr.mxu0 0.0
    %1926 = vmatpush1.msra.mxu0 0.0
    %1927 = vmatprep.subr.mxu0 0.0
    %1928 = vmatpush1.msra.mxu0 0.0
    %1929 = vmatprep.subr.mxu0 0.0
    %1930 = vmatpush1.msra.mxu0 0.0
    %1931 = vmatprep.subr.mxu0 0.0
    %1932 = vmatpush1.msra.mxu0 0.0
    %1933 = vmatprep.subr.mxu0 0.0
    %1934 = vmatpush1.msra.mxu0 0.0
    %1935 = vmatprep.subr.mxu0 0.0
    %1936 = vmatpush1.msra.mxu0 0.0
    %1937 = vmatprep.subr.mxu0 0.0
    %1938 = vmatpush1.msra.mxu0 0.0
    %1939 = vmatprep.subr.mxu0 0.0
    %1940 = vmatpush1.msra.mxu0 0.0
    %1941 = vmatprep.subr.mxu0 0.0
    %1942 = vmatpush1.msra.mxu0 0.0
    %1943 = vmatprep.subr.mxu0 0.0
    %1944 = vmatpush1.msra.mxu0 0.0
    %1945 = vmatprep.subr.mxu0 0.0
    %1946 = vmatpush1.msra.mxu0 0.0
    %1947 = vmatprep.subr.mxu0 0.0
    %1948 = vmatpush1.msra.mxu0 0.0
    %1949 = vmatprep.subr.mxu0 0.0
    %1950 = vmatpush1.msra.mxu0 0.0
    %1951 = vmatprep.subr.mxu0 0.0
    %1952 = vmatpush1.msra.mxu0 0.0
    %1953 = vmatprep.subr.mxu0 0.0
    %1954 = vmatpush1.msra.mxu0 0.0
    %1955 = vmatprep.subr.mxu0 0.0
    %1956 = vmatpush1.msra.mxu0 0.0
    %1957 = vmatprep.subr.mxu0 0.0
    %1958 = vmatpush1.msra.mxu0 0.0
    %1959 = vmatprep.subr.mxu0 0.0
    %1960 = vmatpush1.msra.mxu0 0.0
    %1961 = vmatprep.subr.mxu0 0.0
    %1962 = vmatpush1.msra.mxu0 0.0
    %1963 = vmatprep.subr.mxu0 0.0
    %1964 = vmatpush1.msra.mxu0 0.0
    %1965 = vmatprep.subr.mxu0 0.0
    %1966 = vmatpush1.msra.mxu0 0.0
    %1967 = vmatprep.mubr.f32.mxu0 0.0
    %1968 = vmatmul.mubr.f32.gmra.mrb[0].mxu0 %v1898
    %v1969 = vpop.f32.mrb[0].mxu0
    %v1970 = vadd.f32 %v1895, %v1969
    %v1971 = vpop.f32.mrb[0].mxu0
    %1972 = vmatprep.mubr.f32.mxu0 0.0
    %1973 = vmatmul.mubr.f32.gmra.mrb[0].mxu0 %v1901
    %v1974 = vpop.f32.mrb[0].mxu0
    %v1975 = vadd.f32 %v1895, %v1974
    %v1976 = vpop.f32.mrb[0].mxu0
    %1977 = vdwg.mxu0
    %v1978 = vadd.f32 %v1472, %v1970
    %v1979 = vadd.f32 %v1473, %v1975
    %v1980 = vmul.f32 %v1978, 0.70710677
    %v1981 = vmul.f32 %v1979, 0.70710677
    %v1982 = vadd.f32 %v1980, %v1324
    %v1983 = vadd.f32 %v1981, %v1325
    %v1984 = vmul.f32 %v1982, 0.70710677
    %v1985 = vmul.f32 %v1983, 0.70710677
    %v1986 = vld [vmem:[%s16] sm:$0xff]
    %v1987 = vld [vmem:[%s16 + $0x8] sm:$0xff]
    %v1988 = vld [vmem:[%s16 + $0x10] sm:$0xff]
    %v1989 = vld [vmem:[%s16 + $0x18] sm:$0xff]
    %v1990 = vld [vmem:[%s17] sm:$0x1]
    %v1992 = vlaneseq
    %v1993 = vshrl.u32 %v1992, 7
    %v1994 = vsub.s32 0, %v1993
    %v1995 = vrot.slane %v1990, %v1994
    %v1998 = vsel %vm82, %v1984, 0
    %v2001 = vsel %vm82, %v1985, 0
    %2003 = vmatprep.subr.mxu0 0.0
    %2004 = vmatpush1.msra.mxu0 %v1986
    %2005 = vmatprep.subr.mxu0 0.0
    %2006 = vmatpush1.msra.mxu0 %v1987
    %2007 = vmatprep.subr.mxu0 0.0
    %2008 = vmatpush1.msra.mxu0 %v1988
    %2009 = vmatprep.subr.mxu0 0.0
    %2010 = vmatpush1.msra.mxu0 %v1989
    %2011 = vmatprep.subr.mxu0 0.0
    %2012 = vmatpush1.msra.mxu0 0.0
    %2013 = vmatprep.subr.mxu0 0.0
    %2014 = vmatpush1.msra.mxu0 0.0
    %2015 = vmatprep.subr.mxu0 0.0
    %2016 = vmatpush1.msra.mxu0 0.0
    %2017 = vmatprep.subr.mxu0 0.0
    %2018 = vmatpush1.msra.mxu0 0.0
    %2019 = vmatprep.subr.mxu0 0.0
    %2020 = vmatpush1.msra.mxu0 0.0
    %2021 = vmatprep.subr.mxu0 0.0
    %2022 = vmatpush1.msra.mxu0 0.0
    %2023 = vmatprep.subr.mxu0 0.0
    %2024 = vmatpush1.msra.mxu0 0.0
    %2025 = vmatprep.subr.mxu0 0.0
    %2026 = vmatpush1.msra.mxu0 0.0
    %2027 = vmatprep.subr.mxu0 0.0
    %2028 = vmatpush1.msra.mxu0 0.0
    %2029 = vmatprep.subr.mxu0 0.0
    %2030 = vmatpush1.msra.mxu0 0.0
    %2031 = vmatprep.subr.mxu0 0.0
    %2032 = vmatpush1.msra.mxu0 0.0
    %2033 = vmatprep.subr.mxu0 0.0
    %2034 = vmatpush1.msra.mxu0 0.0
    %2035 = vmatprep.subr.mxu0 0.0
    %2036 = vmatpush1.msra.mxu0 0.0
    %2037 = vmatprep.subr.mxu0 0.0
    %2038 = vmatpush1.msra.mxu0 0.0
    %2039 = vmatprep.subr.mxu0 0.0
    %2040 = vmatpush1.msra.mxu0 0.0
    %2041 = vmatprep.subr.mxu0 0.0
    %2042 = vmatpush1.msra.mxu0 0.0
    %2043 = vmatprep.subr.mxu0 0.0
    %2044 = vmatpush1.msra.mxu0 0.0
    %2045 = vmatprep.subr.mxu0 0.0
    %2046 = vmatpush1.msra.mxu0 0.0
    %2047 = vmatprep.subr.mxu0 0.0
    %2048 = vmatpush1.msra.mxu0 0.0
    %2049 = vmatprep.subr.mxu0 0.0
    %2050 = vmatpush1.msra.mxu0 0.0
    %2051 = vmatprep.subr.mxu0 0.0
    %2052 = vmatpush1.msra.mxu0 0.0
    %2053 = vmatprep.subr.mxu0 0.0
    %2054 = vmatpush1.msra.mxu0 0.0
    %2055 = vmatprep.subr.mxu0 0.0
    %2056 = vmatpush1.msra.mxu0 0.0
    %2057 = vmatprep.subr.mxu0 0.0
    %2058 = vmatpush1.msra.mxu0 0.0
    %2059 = vmatprep.subr.mxu0 0.0
    %2060 = vmatpush1.msra.mxu0 0.0
    %2061 = vmatprep.subr.mxu0 0.0
    %2062 = vmatpush1.msra.mxu0 0.0
    %2063 = vmatprep.subr.mxu0 0.0
    %2064 = vmatpush1.msra.mxu0 0.0
    %2065 = vmatprep.subr.mxu0 0.0
    %2066 = vmatpush1.msra.mxu0 0.0
    %2067 = vmatprep.mubr.f32.mxu0 0.0
    %2068 = vmatmul.mubr.f32.gmra.mrb[0].mxu0 %v1998
    %v2069 = vpop.f32.mrb[0].mxu0
    %v2070 = vadd.f32 %v1995, %v2069
    %v2071 = vpop.f32.mrb[0].mxu0
    %2072 = vmatprep.mubr.f32.mxu0 0.0
    %2073 = vmatmul.mubr.f32.gmra.mrb[0].mxu0 %v2001
    %v2074 = vpop.f32.mrb[0].mxu0
    %v2075 = vadd.f32 %v1995, %v2074
    %v2076 = vpop.f32.mrb[0].mxu0
    %2077 = vdwg.mxu0
    %v2078 = vld [vmem:[%s18] sm:$0xff]
    %v2079 = vld [vmem:[%s18 + $0x8] sm:$0xff]
    %v2080 = vld [vmem:[%s18 + $0x10] sm:$0xff]
    %v2081 = vld [vmem:[%s18 + $0x18] sm:$0xff]
    %v2082 = vld [vmem:[%s19] sm:$0x1]
    %v2084 = vlaneseq
    %v2085 = vshrl.u32 %v2084, 7
    %v2086 = vsub.s32 0, %v2085
    %v2087 = vrot.slane %v2082, %v2086
    %v2090 = vsel %vm82, %v2070, 0
    %v2093 = vsel %vm82, %v2075, 0
    %2095 = vmatprep.subr.mxu0 0.0
    %2096 = vmatpush1.msra.mxu0 %v2078
    %2097 = vmatprep.subr.mxu0 0.0
    %2098 = vmatpush1.msra.mxu0 %v2079
    %2099 = vmatprep.subr.mxu0 0.0
    %2100 = vmatpush1.msra.mxu0 %v2080
    %2101 = vmatprep.subr.mxu0 0.0
    %2102 = vmatpush1.msra.mxu0 %v2081
    %2103 = vmatprep.subr.mxu0 0.0
    %2104 = vmatpush1.msra.mxu0 0.0
    %2105 = vmatprep.subr.mxu0 0.0
    %2106 = vmatpush1.msra.mxu0 0.0
    %2107 = vmatprep.subr.mxu0 0.0
    %2108 = vmatpush1.msra.mxu0 0.0
    %2109 = vmatprep.subr.mxu0 0.0
    %2110 = vmatpush1.msra.mxu0 0.0
    %2111 = vmatprep.subr.mxu0 0.0
    %2112 = vmatpush1.msra.mxu0 0.0
    %2113 = vmatprep.subr.mxu0 0.0
    %2114 = vmatpush1.msra.mxu0 0.0
    %2115 = vmatprep.subr.mxu0 0.0
    %2116 = vmatpush1.msra.mxu0 0.0
    %2117 = vmatprep.subr.mxu0 0.0
    %2118 = vmatpush1.msra.mxu0 0.0
    %2119 = vmatprep.subr.mxu0 0.0
    %2120 = vmatpush1.msra.mxu0 0.0
    %2121 = vmatprep.subr.mxu0 0.0
    %2122 = vmatpush1.msra.mxu0 0.0
    %2123 = vmatprep.subr.mxu0 0.0
    %2124 = vmatpush1.msra.mxu0 0.0
    %2125 = vmatprep.subr.mxu0 0.0
    %2126 = vmatpush1.msra.mxu0 0.0
    %2127 = vmatprep.subr.mxu0 0.0
    %2128 = vmatpush1.msra.mxu0 0.0
    %2129 = vmatprep.subr.mxu0 0.0
    %2130 = vmatpush1.msra.mxu0 0.0
    %2131 = vmatprep.subr.mxu0 0.0
    %2132 = vmatpush1.msra.mxu0 0.0
    %2133 = vmatprep.subr.mxu0 0.0
    %2134 = vmatpush1.msra.mxu0 0.0
    %2135 = vmatprep.subr.mxu0 0.0
    %2136 = vmatpush1.msra.mxu0 0.0
    %2137 = vmatprep.subr.mxu0 0.0
    %2138 = vmatpush1.msra.mxu0 0.0
    %2139 = vmatprep.subr.mxu0 0.0
    %2140 = vmatpush1.msra.mxu0 0.0
    %2141 = vmatprep.subr.mxu0 0.0
    %2142 = vmatpush1.msra.mxu0 0.0
    %2143 = vmatprep.subr.mxu0 0.0
    %2144 = vmatpush1.msra.mxu0 0.0
    %2145 = vmatprep.subr.mxu0 0.0
    %2146 = vmatpush1.msra.mxu0 0.0
    %2147 = vmatprep.subr.mxu0 0.0
    %2148 = vmatpush1.msra.mxu0 0.0
    %2149 = vmatprep.subr.mxu0 0.0
    %2150 = vmatpush1.msra.mxu0 0.0
    %2151 = vmatprep.subr.mxu0 0.0
    %2152 = vmatpush1.msra.mxu0 0.0
    %2153 = vmatprep.subr.mxu0 0.0
    %2154 = vmatpush1.msra.mxu0 0.0
    %2155 = vmatprep.subr.mxu0 0.0
    %2156 = vmatpush1.msra.mxu0 0.0
    %2157 = vmatprep.subr.mxu0 0.0
    %2158 = vmatpush1.msra.mxu0 0.0
    %2159 = vmatprep.mubr.f32.mxu0 0.0
    %2160 = vmatmul.mubr.f32.gmra.mrb[0].mxu0 %v2090
    %v2161 = vpop.f32.mrb[0].mxu0
    %v2162 = vadd.f32 %v2087, %v2161
    %v2163 = vpop.f32.mrb[0].mxu0
    %2164 = vmatprep.mubr.f32.mxu0 0.0
    %2165 = vmatmul.mubr.f32.gmra.mrb[0].mxu0 %v2093
    %v2166 = vpop.f32.mrb[0].mxu0
    %v2167 = vadd.f32 %v2087, %v2166
    %v2168 = vpop.f32.mrb[0].mxu0
    %2169 = vdwg.mxu0
    %vm2170 = vcmask 195584
    %2171 = vst.msk [vmem:[#allocation3] sm:$0xff] %vm2170, %v2162
    %2172 = vst.msk [vmem:[#allocation3 + $0x8] sm:$0xff] %vm2170, %v2167
    // Predicated region
    $region82: #{seq2seq_forward.1} parent=1 // pred_check
      _
    $region83: #{seq2seq_forward.1} parent=1 // pred_check_branch
      %2174 = sbr.rel (0) target = $region85
    $region84: #{seq2seq_forward.1} parent=1 // pred_region
      %s2176 = ssub.s32 256, 256
      %2177 = vsyncadd [#allocation4], %s2176
      %s2178 = sshll.u32 [#allocation3], 4
      %s2179 = int_to_ptr.vmem [resolvable:$true] %s2178
      %2184 = dma.vmem_to_hbm [thread:$0]  %s2179, 256, %s20, [#allocation4], 128, 128, 8
    $region85: #{seq2seq_forward.1} parent=1 // pred_fallthru
      _
    // Predicated region
    $region86: #{seq2seq_forward.1} parent=1 // pred_check
      _
    $region87: #{seq2seq_forward.1} parent=1 // pred_check_branch
      %2186 = sbr.rel (0) target = $region89
    $region88: #{seq2seq_forward.1} parent=1 // pred_region
      %s2188 = ssub.s32 256, 256
      %2189 = vsyncadd [#allocation6], %s2188
      %s2190 = sshll.u32 [#allocation5], 4
      %s2191 = int_to_ptr.vmem [resolvable:$true] %s2190
      %2196 = dma.vmem_to_hbm [thread:$0]  %s2191, 256, %s21, [#allocation6], 128, 128, 8
    $region89: #{seq2seq_forward.1} parent=1 // pred_fallthru
      _
    // Predicated region
    $region90: #{seq2seq_forward.1} parent=1 // pred_check
      _
    $region91: #{seq2seq_forward.1} parent=1 // pred_check_branch
      %2198 = sbr.rel (0) target = $region93
    $region92: #{seq2seq_forward.1} parent=1 // pred_region
      %2199 = dma.done [#allocation4], 256
    $region93: #{seq2seq_forward.1} parent=1 // pred_fallthru
      _
    // Predicated region
    $region94: #{seq2seq_forward.1} parent=1 // pred_check
      _
    $region95: #{seq2seq_forward.1} parent=1 // pred_check_branch
      %2201 = sbr.rel (0) target = $region97
    $region96: #{seq2seq_forward.1} parent=1 // pred_region
      %2202 = dma.done [#allocation6], 256
    $region97: #{seq2seq_forward.1} parent=1 // pred_fallthru
      _
    %2203 = vsyncpa [#allocation4], 1
    %2204 = vsyncpa [#allocation6], 1

</llo_original>
